<compile_context>
chip_gen: v5e
topology: v5e:2x2
jax: 0.10.0
libtpu: 0.0.40
codegen_flags: <defaults>
</compile_context>

<pallas_src>
import functools

import jax
import jax.numpy as jnp
import numpy as np
from jax.experimental import pallas as pl
from jax.experimental.pallas import tpu as pltpu


def _round_up(x, m):
    return (x + m - 1) // m * m


def bilstm_attention_kernel(T, BT, H,
                            x_ref, w_in_ref, b_in_ref, whh_ref,
                            wa_ref, ba_ref, wfc_ref, bfc_ref,
                            out_ref,
                            xw_ref):
    """One batch tile.

    x_ref:    (T, BT, D)    time-major input tile (batch zero-padded, D unpadded)
    w_in_ref: (D, 8H)       [W_ih_fwd | W_ih_rev], pre-transposed
    b_in_ref: (1, 8H)       combined ih+hh biases for both directions
    whh_ref:  (2H, 8H)      block-diagonal [W_hh_fwd 0; 0 W_hh_rev], pre-transposed
    wa_ref:   (2H, 1)       attention Linear(2H, 1) weight (transposed)
    ba_ref:   (1, 1)        attention bias
    wfc_ref:  (2H, OP)      fc weight (transposed, output dim padded to 128 lanes)
    bfc_ref:  (1, OP)       fc bias (padded)
    out_ref:  (BT, OP)      lane-dense output slab
    xw_ref:   (T*BT, 8H)    scratch: hoisted input projections (both directions)
    """
    G = 4 * H
    D = x_ref.shape[-1]

    # ---- hoisted input projection: one MXU matmul covering both directions ----
    x2d = x_ref[...].reshape(T * BT, D)
    xw_ref[...] = (jnp.dot(x2d, w_in_ref[...], preferred_element_type=jnp.float32)
                   + b_in_ref[...])                              # (T*BT, 8H)

    whh = whh_ref[...]                                           # loaded once

    def sig(z):
        # single-EUP sigmoid: sigmoid(z) = 0.5*tanh(0.5*z) + 0.5
        return 0.5 * jnp.tanh(0.5 * z) + 0.5

    def cell(z, c):
        # gate order i, f, g, o (PyTorch LSTM convention)
        i = sig(z[:, 0 * H:1 * H])
        f = sig(z[:, 1 * H:2 * H])
        g = jnp.tanh(z[:, 2 * H:3 * H])
        o = sig(z[:, 3 * H:4 * H])
        c_new = f * c + i * g
        h_new = o * jnp.tanh(c_new)
        return h_new, c_new

    zeros_h = jnp.zeros((BT, H), jnp.float32)
    c_f, c_r = zeros_h, zeros_h
    h_cat = jnp.zeros((BT, 2 * H), jnp.float32)   # [h_fwd | h_rev] carried in registers
    hs_f = [None] * T
    hs_r = [None] * T

    # ---- fused fwd+rev recurrence, fully unrolled, ONE recurrent matmul/step ----
    for s in range(T):
        tf = s
        tr = T - 1 - s
        z = jnp.dot(h_cat, whh, preferred_element_type=jnp.float32)   # (BT, 8H)
        zf = xw_ref[tf * BT:(tf + 1) * BT, 0:G] + z[:, 0:G]
        zr = xw_ref[tr * BT:(tr + 1) * BT, G:2 * G] + z[:, G:2 * G]
        h_f, c_f = cell(zf, c_f)
        h_r, c_r = cell(zr, c_r)
        hs_f[tf] = h_f
        hs_r[tr] = h_r
        h_cat = jnp.concatenate([h_f, h_r], axis=1)

    # ---- attention: states stay register-resident, one lane-dense assembly ----
    hcat = jnp.concatenate(
        [jnp.concatenate([hs_f[t], hs_r[t]], axis=1) for t in range(T)],
        axis=0)                                                   # (T*BT, 2H)
    scores = (jnp.dot(hcat, wa_ref[...], preferred_element_type=jnp.float32)
              + ba_ref[...])                                      # (T*BT, 1)
    s_tb = scores.reshape(T, BT, 1)
    m = jnp.max(s_tb, axis=0, keepdims=True)
    e = jnp.exp(s_tb - m)
    attn = e / jnp.sum(e, axis=0, keepdims=True)                  # exact softmax

    # ---- weighted context + final fc (lane-dense OP output) ----
    ctx = jnp.sum(hcat.reshape(T, BT, 2 * H) * attn, axis=0)      # (BT, 2H)
    out_ref[...] = (jnp.dot(ctx, wfc_ref[...], preferred_element_type=jnp.float32)
                    + bfc_ref[...])


def bilstm_attention_forward(x, params, *, batch_tile=None):
    """x: (batch, input_dim, seq), same layout the PyTorch module consumes."""
    B, D, T = x.shape
    H = params["whh_f"].shape[0]                                  # whh stored (H, 4H)
    O = params["bfc"].shape[1]
    G = 4 * H

    if batch_tile is None:
        # Fill MXU rows when the batch allows (cap at 256 = v6e/v7x MXU height);
        # small batches become a single fat tile (grid overhead ~0.35us/step).
        batch_tile = min(_round_up(B, 8), 256)
    BT = batch_tile
    BP = _round_up(B, BT)
    nb = BP // BT
    OP = _round_up(O, 128)                                        # lane-dense output slab

    # time-major, batch-padded input: (T, BP, D) — feature dim NOT padded
    xt = jnp.transpose(x, (2, 0, 1)).astype(jnp.float32)
    xt = jnp.pad(xt, ((0, 0), (0, BP - B), (0, 0)))

    # pack parameters
    w_in = jnp.concatenate([params["wih_f"], params["wih_r"]], axis=1)     # (D, 8H)
    b_in = jnp.concatenate([params["bf"], params["br"]], axis=1)           # (1, 8H)
    zero_blk = jnp.zeros((H, G), jnp.float32)
    whh_blk = jnp.concatenate(                                             # (2H, 8H)
        [jnp.concatenate([params["whh_f"], zero_blk], axis=1),
         jnp.concatenate([zero_blk, params["whh_r"]], axis=1)], axis=0)
    wa_t = params["wa"].T                                                  # (2H, 1)
    wfc = jnp.pad(params["wfc"], ((0, 0), (0, OP - O)))                    # (2H, OP)
    bfc = jnp.pad(params["bfc"], ((0, 0), (0, OP - O)))                    # (1, OP)

    def full_spec(a):
        return pl.BlockSpec(a.shape, lambda i, nd=a.ndim: (0,) * nd)

    kernel = functools.partial(bilstm_attention_kernel, T, BT, H)

    out = pl.pallas_call(
        kernel,
        out_shape=jax.ShapeDtypeStruct((BP, OP), jnp.float32),
        grid=(nb,),
        in_specs=[
            pl.BlockSpec((T, BT, D), lambda i: (0, i, 0)),        # x: batch-tiled
            full_spec(w_in), full_spec(b_in), full_spec(whh_blk),
            full_spec(wa_t), full_spec(params["ba"]),
            full_spec(wfc), full_spec(bfc),
        ],
        out_specs=pl.BlockSpec((BT, OP), lambda i: (i, 0)),
        scratch_shapes=[
            pltpu.VMEM((T * BT, 8 * H), jnp.float32),             # hoisted x @ W_ih
        ],
        compiler_params=pltpu.CompilerParams(
            dimension_semantics=("parallel",),                    # shard batch tiles across TCs
            vmem_limit_bytes=32 * 1024 * 1024),                   # ~2 MiB actual at BT=256
    )(xt, w_in, b_in, whh_blk, wa_t, params["ba"], wfc, bfc)

    return out[:B, :O]


def make_params(key, input_dim, hidden_dim, output_dim):
    """Deterministic synthetic parameters (PyTorch-style uniform init)."""
    H, D, O = hidden_dim, input_dim, output_dim
    k_lstm = 1.0 / np.sqrt(H)
    k_attn = 1.0 / np.sqrt(2 * H)
    keys = jax.random.split(key, 12)

    def u(k, shape, bound):
        return jax.random.uniform(k, shape, jnp.float32, -bound, bound)

    return {
        # LSTM weights pre-transposed: (in_features, 4H); combined ih+hh bias
        "wih_f": u(keys[0], (D, 4 * H), k_lstm),
        "whh_f": u(keys[1], (H, 4 * H), k_lstm),
        "bf":    u(keys[2], (1, 4 * H), k_lstm) + u(keys[3], (1, 4 * H), k_lstm),
        "wih_r": u(keys[4], (D, 4 * H), k_lstm),
        "whh_r": u(keys[5], (H, 4 * H), k_lstm),
        "br":    u(keys[6], (1, 4 * H), k_lstm) + u(keys[7], (1, 4 * H), k_lstm),
        # attention Linear(2H, 1): weight (1, 2H), bias scalar
        "wa":    u(keys[8], (1, 2 * H), k_attn),
        "ba":    u(keys[9], (1, 1), k_attn),
        # fc Linear(2H, O): weight pre-transposed to (2H, O)
        "wfc":   u(keys[10], (2 * H, O), k_attn),
        "bfc":   u(keys[11], (1, O), k_attn),
    }


def reference_forward(x, params):
    """Pure-JAX reference mirroring the PyTorch forward semantics."""
    B, D, T = x.shape
    H = params["whh_f"].shape[0]
    xt = jnp.transpose(x, (2, 0, 1)).astype(jnp.float32)          # (T, B, D)

    def run_dir(wih, whh, b, reverse):
        def step(carry, x_t):
            h, c = carry
            z = x_t @ wih + h @ whh + b[0]
            i = jax.nn.sigmoid(z[:, :H])
            f = jax.nn.sigmoid(z[:, H:2 * H])
            g = jnp.tanh(z[:, 2 * H:3 * H])
            o = jax.nn.sigmoid(z[:, 3 * H:])
            c = f * c + i * g
            h = o * jnp.tanh(c)
            return (h, c), h
        seq = xt[::-1] if reverse else xt
        _, hs = jax.lax.scan(step, (jnp.zeros((B, H)), jnp.zeros((B, H))), seq)
        return hs[::-1] if reverse else hs                        # (T, B, H)

    hf = run_dir(params["wih_f"], params["whh_f"], params["bf"], False)
    hr = run_dir(params["wih_r"], params["whh_r"], params["br"], True)
    lstm_out = jnp.concatenate([hf, hr], axis=-1)                 # (T, B, 2H)
    scores = jnp.einsum("tbh,h->tb", lstm_out, params["wa"][0]) + params["ba"][0, 0]
    attn = jax.nn.softmax(scores, axis=0)                         # softmax over seq
    ctx = jnp.einsum("tb,tbh->bh", attn, lstm_out)                # (B, 2H)
    return ctx @ params["wfc"] + params["bfc"]


if __name__ == "__main__":
    B, D_IN, T = 2, 4, 8          # batch, input_dim (channels), seq length
    H, O = 32, 4                  # hidden_dim, output_dim

    key = jax.random.PRNGKey(0)
    kx, kp = jax.random.split(key)
    x = jax.random.normal(kx, (B, D_IN, T), jnp.float32)   # (batch, input_dim, seq)
    params = make_params(kp, D_IN, H, O)

    out = jax.block_until_ready(bilstm_attention_forward(x, params))
    ref = jax.block_until_ready(reference_forward(x, params))

    np.testing.assert_allclose(np.asarray(out), np.asarray(ref), rtol=1e-3, atol=1e-4)
    assert out.shape == (B, O)
    print("KERNEL_OK")
</pallas_src>

<mosaic_0001>
module attributes {stable_mosaic.version = 11 : i64} {
  func.func @bilstm_attention_kernel(%arg0: i32, %arg1: memref<8x8x4xf32, #tpu.memory_space<vmem>>, %arg2: memref<4x256xf32, #tpu.memory_space<vmem>>, %arg3: memref<1x256xf32, #tpu.memory_space<vmem>>, %arg4: memref<64x256xf32, #tpu.memory_space<vmem>>, %arg5: memref<64x1xf32, #tpu.memory_space<vmem>>, %arg6: memref<1x1xf32, #tpu.memory_space<vmem>>, %arg7: memref<64x128xf32, #tpu.memory_space<vmem>>, %arg8: memref<1x128xf32, #tpu.memory_space<vmem>>, %arg9: memref<8x128xf32, #tpu.memory_space<vmem>>, %arg10: memref<64x256xf32, #tpu.memory_space<vmem>>) attributes {dimension_semantics = [#tpu.dimension_semantics<parallel>], iteration_bounds = array<i64: 1>, scalar_prefetch = 0 : i64, scratch_operands = 1 : i64, tpu.core_type = #tpu.core_type<tc>, window_params = [{transform_indices = @transform_0, window_bounds = array<i64: 8, 8, 4>}, {pipeline_mode = #tpu.pipeline_mode<synchronous>, transform_indices = @transform_1, window_bounds = array<i64: 4, 256>}, {pipeline_mode = #tpu.pipeline_mode<synchronous>, transform_indices = @transform_2, window_bounds = array<i64: 1, 256>}, {pipeline_mode = #tpu.pipeline_mode<synchronous>, transform_indices = @transform_3, window_bounds = array<i64: 64, 256>}, {pipeline_mode = #tpu.pipeline_mode<synchronous>, transform_indices = @transform_4, window_bounds = array<i64: 64, 1>}, {pipeline_mode = #tpu.pipeline_mode<synchronous>, transform_indices = @transform_5, window_bounds = array<i64: 1, 1>}, {pipeline_mode = #tpu.pipeline_mode<synchronous>, transform_indices = @transform_6, window_bounds = array<i64: 64, 128>}, {pipeline_mode = #tpu.pipeline_mode<synchronous>, transform_indices = @transform_7, window_bounds = array<i64: 1, 128>}, {transform_indices = @transform_8, window_bounds = array<i64: 8, 128>}]} {
    %c0 = arith.constant 0 : index
    %c0_0 = arith.constant 0 : index
    %c0_1 = arith.constant 0 : index
    %0 = vector.load %arg1[%c0, %c0_0, %c0_1] : memref<8x8x4xf32, #tpu.memory_space<vmem>>, vector<8x8x4xf32>
    %1 = vector.shape_cast %0 : vector<8x8x4xf32> to vector<64x4xf32>
    %c0_2 = arith.constant 0 : index
    %c0_3 = arith.constant 0 : index
    %2 = vector.load %arg2[%c0_2, %c0_3] : memref<4x256xf32, #tpu.memory_space<vmem>>, vector<4x256xf32>
    %cst = arith.constant dense<0.000000e+00> : vector<64x256xf32>
    %3 = tpu.matmul %1, %2, %cst {dimension_numbers = #tpu.dot_dimension_numbers<[1], [0], [0], [1], [0, 0, 1, 1], [], []>} : vector<64x4xf32>, vector<4x256xf32>, vector<64x256xf32> -> vector<64x256xf32>
    %c0_4 = arith.constant 0 : index
    %c0_5 = arith.constant 0 : index
    %4 = vector.load %arg3[%c0_4, %c0_5] : memref<1x256xf32, #tpu.memory_space<vmem>>, vector<1x256xf32>
    %5 = vector.broadcast %4 : vector<1x256xf32> to vector<64x256xf32>
    %6 = arith.addf %3, %5 : vector<64x256xf32>
    %c0_6 = arith.constant 0 : index
    %c0_7 = arith.constant 0 : index
    %7 = vector.load %arg10[%c0_6, %c0_7] : memref<64x256xf32, #tpu.memory_space<vmem>>, vector<64x256xf32>
    tpu.vector_store %arg10[%c0_6, %c0_7], %6 {strides = array<i32>} : memref<64x256xf32, #tpu.memory_space<vmem>>, vector<64x256xf32>,
    %c0_8 = arith.constant 0 : index
    %c0_9 = arith.constant 0 : index
    %8 = vector.load %arg4[%c0_8, %c0_9] : memref<64x256xf32, #tpu.memory_space<vmem>>, vector<64x256xf32>
    %cst_10 = arith.constant 0.000000e+00 : f32
    %9 = vector.broadcast %cst_10 : f32 to vector<8x32xf32>
    %cst_11 = arith.constant 0.000000e+00 : f32
    %10 = vector.broadcast %cst_11 : f32 to vector<8x64xf32>
    %cst_12 = arith.constant dense<0.000000e+00> : vector<8x256xf32>
    %11 = tpu.matmul %10, %8, %cst_12 {dimension_numbers = #tpu.dot_dimension_numbers<[1], [0], [0], [1], [0, 0, 1, 1], [], []>} : vector<8x64xf32>, vector<64x256xf32>, vector<8x256xf32> -> vector<8x256xf32>
    %c0_13 = arith.constant 0 : index
    %c0_14 = arith.constant 0 : index
    %12 = vector.load %arg10[%c0_13, %c0_14] : memref<64x256xf32, #tpu.memory_space<vmem>>, vector<8x128xf32>
    %13 = vector.extract_strided_slice %11 {offsets = [0, 0], sizes = [8, 128], strides = [1, 1]} : vector<8x256xf32> to vector<8x128xf32>
    %14 = arith.addf %12, %13 : vector<8x128xf32>
    %c56 = arith.constant 56 : index
    %c128 = arith.constant 128 : index
    %15 = vector.load %arg10[%c56, %c128] : memref<64x256xf32, #tpu.memory_space<vmem>>, vector<8x128xf32>
    %16 = vector.extract_strided_slice %11 {offsets = [0, 128], sizes = [8, 128], strides = [1, 1]} : vector<8x256xf32> to vector<8x128xf32>
    %17 = arith.addf %15, %16 : vector<8x128xf32>
    %18 = vector.extract_strided_slice %14 {offsets = [0, 0], sizes = [8, 32], strides = [1, 1]} : vector<8x128xf32> to vector<8x32xf32>
    %cst_15 = arith.constant 5.000000e-01 : f32
    %19 = vector.broadcast %cst_15 : f32 to vector<8x32xf32>
    %20 = arith.mulf %19, %18 : vector<8x32xf32>
    %21 = math.tanh %20 : vector<8x32xf32>
    %cst_16 = arith.constant 5.000000e-01 : f32
    %22 = vector.broadcast %cst_16 : f32 to vector<8x32xf32>
    %23 = arith.mulf %22, %21 : vector<8x32xf32>
    %cst_17 = arith.constant 5.000000e-01 : f32
    %24 = vector.broadcast %cst_17 : f32 to vector<8x32xf32>
    %25 = arith.addf %23, %24 : vector<8x32xf32>
    %26 = vector.extract_strided_slice %14 {offsets = [0, 32], sizes = [8, 32], strides = [1, 1]} : vector<8x128xf32> to vector<8x32xf32>
    %cst_18 = arith.constant 5.000000e-01 : f32
    %27 = vector.broadcast %cst_18 : f32 to vector<8x32xf32>
    %28 = arith.mulf %27, %26 : vector<8x32xf32>
    %29 = math.tanh %28 : vector<8x32xf32>
    %cst_19 = arith.constant 5.000000e-01 : f32
    %30 = vector.broadcast %cst_19 : f32 to vector<8x32xf32>
    %31 = arith.mulf %30, %29 : vector<8x32xf32>
    %cst_20 = arith.constant 5.000000e-01 : f32
    %32 = vector.broadcast %cst_20 : f32 to vector<8x32xf32>
    %33 = arith.addf %31, %32 : vector<8x32xf32>
    %34 = vector.extract_strided_slice %14 {offsets = [0, 64], sizes = [8, 32], strides = [1, 1]} : vector<8x128xf32> to vector<8x32xf32>
    %35 = math.tanh %34 : vector<8x32xf32>
    %36 = vector.extract_strided_slice %14 {offsets = [0, 96], sizes = [8, 32], strides = [1, 1]} : vector<8x128xf32> to vector<8x32xf32>
    %cst_21 = arith.constant 5.000000e-01 : f32
    %37 = vector.broadcast %cst_21 : f32 to vector<8x32xf32>
    %38 = arith.mulf %37, %36 : vector<8x32xf32>
    %39 = math.tanh %38 : vector<8x32xf32>
    %cst_22 = arith.constant 5.000000e-01 : f32
    %40 = vector.broadcast %cst_22 : f32 to vector<8x32xf32>
    %41 = arith.mulf %40, %39 : vector<8x32xf32>
    %cst_23 = arith.constant 5.000000e-01 : f32
    %42 = vector.broadcast %cst_23 : f32 to vector<8x32xf32>
    %43 = arith.addf %41, %42 : vector<8x32xf32>
    %44 = arith.mulf %33, %9 : vector<8x32xf32>
    %45 = arith.mulf %25, %35 : vector<8x32xf32>
    %46 = arith.addf %44, %45 : vector<8x32xf32>
    %47 = math.tanh %46 : vector<8x32xf32>
    %48 = arith.mulf %43, %47 : vector<8x32xf32>
    %49 = vector.extract_strided_slice %17 {offsets = [0, 0], sizes = [8, 32], strides = [1, 1]} : vector<8x128xf32> to vector<8x32xf32>
    %cst_24 = arith.constant 5.000000e-01 : f32
    %50 = vector.broadcast %cst_24 : f32 to vector<8x32xf32>
    %51 = arith.mulf %50, %49 : vector<8x32xf32>
    %52 = math.tanh %51 : vector<8x32xf32>
    %cst_25 = arith.constant 5.000000e-01 : f32
    %53 = vector.broadcast %cst_25 : f32 to vector<8x32xf32>
    %54 = arith.mulf %53, %52 : vector<8x32xf32>
    %cst_26 = arith.constant 5.000000e-01 : f32
    %55 = vector.broadcast %cst_26 : f32 to vector<8x32xf32>
    %56 = arith.addf %54, %55 : vector<8x32xf32>
    %57 = vector.extract_strided_slice %17 {offsets = [0, 32], sizes = [8, 32], strides = [1, 1]} : vector<8x128xf32> to vector<8x32xf32>
    %cst_27 = arith.constant 5.000000e-01 : f32
    %58 = vector.broadcast %cst_27 : f32 to vector<8x32xf32>
    %59 = arith.mulf %58, %57 : vector<8x32xf32>
    %60 = math.tanh %59 : vector<8x32xf32>
    %cst_28 = arith.constant 5.000000e-01 : f32
    %61 = vector.broadcast %cst_28 : f32 to vector<8x32xf32>
    %62 = arith.mulf %61, %60 : vector<8x32xf32>
    %cst_29 = arith.constant 5.000000e-01 : f32
    %63 = vector.broadcast %cst_29 : f32 to vector<8x32xf32>
    %64 = arith.addf %62, %63 : vector<8x32xf32>
    %65 = vector.extract_strided_slice %17 {offsets = [0, 64], sizes = [8, 32], strides = [1, 1]} : vector<8x128xf32> to vector<8x32xf32>
    %66 = math.tanh %65 : vector<8x32xf32>
    %67 = vector.extract_strided_slice %17 {offsets = [0, 96], sizes = [8, 32], strides = [1, 1]} : vector<8x128xf32> to vector<8x32xf32>
    %cst_30 = arith.constant 5.000000e-01 : f32
    %68 = vector.broadcast %cst_30 : f32 to vector<8x32xf32>
    %69 = arith.mulf %68, %67 : vector<8x32xf32>
    %70 = math.tanh %69 : vector<8x32xf32>
    %cst_31 = arith.constant 5.000000e-01 : f32
    %71 = vector.broadcast %cst_31 : f32 to vector<8x32xf32>
    %72 = arith.mulf %71, %70 : vector<8x32xf32>
    %cst_32 = arith.constant 5.000000e-01 : f32
    %73 = vector.broadcast %cst_32 : f32 to vector<8x32xf32>
    %74 = arith.addf %72, %73 : vector<8x32xf32>
    %75 = arith.mulf %64, %9 : vector<8x32xf32>
    %76 = arith.mulf %56, %66 : vector<8x32xf32>
    %77 = arith.addf %75, %76 : vector<8x32xf32>
    %78 = math.tanh %77 : vector<8x32xf32>
    %79 = arith.mulf %74, %78 : vector<8x32xf32>
    %80 = tpu.concatenate %48, %79 in 1 : vector<8x32xf32>, vector<8x32xf32> -> vector<8x64xf32>
    %cst_33 = arith.constant dense<0.000000e+00> : vector<8x256xf32>
    %81 = tpu.matmul %80, %8, %cst_33 {dimension_numbers = #tpu.dot_dimension_numbers<[1], [0], [0], [1], [0, 0, 1, 1], [], []>} : vector<8x64xf32>, vector<64x256xf32>, vector<8x256xf32> -> vector<8x256xf32>
    %c8 = arith.constant 8 : index
    %c0_34 = arith.constant 0 : index
    %82 = vector.load %arg10[%c8, %c0_34] : memref<64x256xf32, #tpu.memory_space<vmem>>, vector<8x128xf32>
    %83 = vector.extract_strided_slice %81 {offsets = [0, 0], sizes = [8, 128], strides = [1, 1]} : vector<8x256xf32> to vector<8x128xf32>
    %84 = arith.addf %82, %83 : vector<8x128xf32>
    %c48 = arith.constant 48 : index
    %c128_35 = arith.constant 128 : index
    %85 = vector.load %arg10[%c48, %c128_35] : memref<64x256xf32, #tpu.memory_space<vmem>>, vector<8x128xf32>
    %86 = vector.extract_strided_slice %81 {offsets = [0, 128], sizes = [8, 128], strides = [1, 1]} : vector<8x256xf32> to vector<8x128xf32>
    %87 = arith.addf %85, %86 : vector<8x128xf32>
    %88 = vector.extract_strided_slice %84 {offsets = [0, 0], sizes = [8, 32], strides = [1, 1]} : vector<8x128xf32> to vector<8x32xf32>
    %cst_36 = arith.constant 5.000000e-01 : f32
    %89 = vector.broadcast %cst_36 : f32 to vector<8x32xf32>
    %90 = arith.mulf %89, %88 : vector<8x32xf32>
    %91 = math.tanh %90 : vector<8x32xf32>
    %cst_37 = arith.constant 5.000000e-01 : f32
    %92 = vector.broadcast %cst_37 : f32 to vector<8x32xf32>
    %93 = arith.mulf %92, %91 : vector<8x32xf32>
    %cst_38 = arith.constant 5.000000e-01 : f32
    %94 = vector.broadcast %cst_38 : f32 to vector<8x32xf32>
    %95 = arith.addf %93, %94 : vector<8x32xf32>
    %96 = vector.extract_strided_slice %84 {offsets = [0, 32], sizes = [8, 32], strides = [1, 1]} : vector<8x128xf32> to vector<8x32xf32>
    %cst_39 = arith.constant 5.000000e-01 : f32
    %97 = vector.broadcast %cst_39 : f32 to vector<8x32xf32>
    %98 = arith.mulf %97, %96 : vector<8x32xf32>
    %99 = math.tanh %98 : vector<8x32xf32>
    %cst_40 = arith.constant 5.000000e-01 : f32
    %100 = vector.broadcast %cst_40 : f32 to vector<8x32xf32>
    %101 = arith.mulf %100, %99 : vector<8x32xf32>
    %cst_41 = arith.constant 5.000000e-01 : f32
    %102 = vector.broadcast %cst_41 : f32 to vector<8x32xf32>
    %103 = arith.addf %101, %102 : vector<8x32xf32>
    %104 = vector.extract_strided_slice %84 {offsets = [0, 64], sizes = [8, 32], strides = [1, 1]} : vector<8x128xf32> to vector<8x32xf32>
    %105 = math.tanh %104 : vector<8x32xf32>
    %106 = vector.extract_strided_slice %84 {offsets = [0, 96], sizes = [8, 32], strides = [1, 1]} : vector<8x128xf32> to vector<8x32xf32>
    %cst_42 = arith.constant 5.000000e-01 : f32
    %107 = vector.broadcast %cst_42 : f32 to vector<8x32xf32>
    %108 = arith.mulf %107, %106 : vector<8x32xf32>
    %109 = math.tanh %108 : vector<8x32xf32>
    %cst_43 = arith.constant 5.000000e-01 : f32
    %110 = vector.broadcast %cst_43 : f32 to vector<8x32xf32>
    %111 = arith.mulf %110, %109 : vector<8x32xf32>
    %cst_44 = arith.constant 5.000000e-01 : f32
    %112 = vector.broadcast %cst_44 : f32 to vector<8x32xf32>
    %113 = arith.addf %111, %112 : vector<8x32xf32>
    %114 = arith.mulf %103, %46 : vector<8x32xf32>
    %115 = arith.mulf %95, %105 : vector<8x32xf32>
    %116 = arith.addf %114, %115 : vector<8x32xf32>
    %117 = math.tanh %116 : vector<8x32xf32>
    %118 = arith.mulf %113, %117 : vector<8x32xf32>
    %119 = vector.extract_strided_slice %87 {offsets = [0, 0], sizes = [8, 32], strides = [1, 1]} : vector<8x128xf32> to vector<8x32xf32>
    %cst_45 = arith.constant 5.000000e-01 : f32
    %120 = vector.broadcast %cst_45 : f32 to vector<8x32xf32>
    %121 = arith.mulf %120, %119 : vector<8x32xf32>
    %122 = math.tanh %121 : vector<8x32xf32>
    %cst_46 = arith.constant 5.000000e-01 : f32
    %123 = vector.broadcast %cst_46 : f32 to vector<8x32xf32>
    %124 = arith.mulf %123, %122 : vector<8x32xf32>
    %cst_47 = arith.constant 5.000000e-01 : f32
    %125 = vector.broadcast %cst_47 : f32 to vector<8x32xf32>
    %126 = arith.addf %124, %125 : vector<8x32xf32>
    %127 = vector.extract_strided_slice %87 {offsets = [0, 32], sizes = [8, 32], strides = [1, 1]} : vector<8x128xf32> to vector<8x32xf32>
    %cst_48 = arith.constant 5.000000e-01 : f32
    %128 = vector.broadcast %cst_48 : f32 to vector<8x32xf32>
    %129 = arith.mulf %128, %127 : vector<8x32xf32>
    %130 = math.tanh %129 : vector<8x32xf32>
    %cst_49 = arith.constant 5.000000e-01 : f32
    %131 = vector.broadcast %cst_49 : f32 to vector<8x32xf32>
    %132 = arith.mulf %131, %130 : vector<8x32xf32>
    %cst_50 = arith.constant 5.000000e-01 : f32
    %133 = vector.broadcast %cst_50 : f32 to vector<8x32xf32>
    %134 = arith.addf %132, %133 : vector<8x32xf32>
    %135 = vector.extract_strided_slice %87 {offsets = [0, 64], sizes = [8, 32], strides = [1, 1]} : vector<8x128xf32> to vector<8x32xf32>
    %136 = math.tanh %135 : vector<8x32xf32>
    %137 = vector.extract_strided_slice %87 {offsets = [0, 96], sizes = [8, 32], strides = [1, 1]} : vector<8x128xf32> to vector<8x32xf32>
    %cst_51 = arith.constant 5.000000e-01 : f32
    %138 = vector.broadcast %cst_51 : f32 to vector<8x32xf32>
    %139 = arith.mulf %138, %137 : vector<8x32xf32>
    %140 = math.tanh %139 : vector<8x32xf32>
    %cst_52 = arith.constant 5.000000e-01 : f32
    %141 = vector.broadcast %cst_52 : f32 to vector<8x32xf32>
    %142 = arith.mulf %141, %140 : vector<8x32xf32>
    %cst_53 = arith.constant 5.000000e-01 : f32
    %143 = vector.broadcast %cst_53 : f32 to vector<8x32xf32>
    %144 = arith.addf %142, %143 : vector<8x32xf32>
    %145 = arith.mulf %134, %77 : vector<8x32xf32>
    %146 = arith.mulf %126, %136 : vector<8x32xf32>
    %147 = arith.addf %145, %146 : vector<8x32xf32>
    %148 = math.tanh %147 : vector<8x32xf32>
    %149 = arith.mulf %144, %148 : vector<8x32xf32>
    %150 = tpu.concatenate %118, %149 in 1 : vector<8x32xf32>, vector<8x32xf32> -> vector<8x64xf32>
    %cst_54 = arith.constant dense<0.000000e+00> : vector<8x256xf32>
    %151 = tpu.matmul %150, %8, %cst_54 {dimension_numbers = #tpu.dot_dimension_numbers<[1], [0], [0], [1], [0, 0, 1, 1], [], []>} : vector<8x64xf32>, vector<64x256xf32>, vector<8x256xf32> -> vector<8x256xf32>
    %c16 = arith.constant 16 : index
    %c0_55 = arith.constant 0 : index
    %152 = vector.load %arg10[%c16, %c0_55] : memref<64x256xf32, #tpu.memory_space<vmem>>, vector<8x128xf32>
    %153 = vector.extract_strided_slice %151 {offsets = [0, 0], sizes = [8, 128], strides = [1, 1]} : vector<8x256xf32> to vector<8x128xf32>
    %154 = arith.addf %152, %153 : vector<8x128xf32>
    %c40 = arith.constant 40 : index
    %c128_56 = arith.constant 128 : index
    %155 = vector.load %arg10[%c40, %c128_56] : memref<64x256xf32, #tpu.memory_space<vmem>>, vector<8x128xf32>
    %156 = vector.extract_strided_slice %151 {offsets = [0, 128], sizes = [8, 128], strides = [1, 1]} : vector<8x256xf32> to vector<8x128xf32>
    %157 = arith.addf %155, %156 : vector<8x128xf32>
    %158 = vector.extract_strided_slice %154 {offsets = [0, 0], sizes = [8, 32], strides = [1, 1]} : vector<8x128xf32> to vector<8x32xf32>
    %cst_57 = arith.constant 5.000000e-01 : f32
    %159 = vector.broadcast %cst_57 : f32 to vector<8x32xf32>
    %160 = arith.mulf %159, %158 : vector<8x32xf32>
    %161 = math.tanh %160 : vector<8x32xf32>
    %cst_58 = arith.constant 5.000000e-01 : f32
    %162 = vector.broadcast %cst_58 : f32 to vector<8x32xf32>
    %163 = arith.mulf %162, %161 : vector<8x32xf32>
    %cst_59 = arith.constant 5.000000e-01 : f32
    %164 = vector.broadcast %cst_59 : f32 to vector<8x32xf32>
    %165 = arith.addf %163, %164 : vector<8x32xf32>
    %166 = vector.extract_strided_slice %154 {offsets = [0, 32], sizes = [8, 32], strides = [1, 1]} : vector<8x128xf32> to vector<8x32xf32>
    %cst_60 = arith.constant 5.000000e-01 : f32
    %167 = vector.broadcast %cst_60 : f32 to vector<8x32xf32>
    %168 = arith.mulf %167, %166 : vector<8x32xf32>
    %169 = math.tanh %168 : vector<8x32xf32>
    %cst_61 = arith.constant 5.000000e-01 : f32
    %170 = vector.broadcast %cst_61 : f32 to vector<8x32xf32>
    %171 = arith.mulf %170, %169 : vector<8x32xf32>
    %cst_62 = arith.constant 5.000000e-01 : f32
    %172 = vector.broadcast %cst_62 : f32 to vector<8x32xf32>
    %173 = arith.addf %171, %172 : vector<8x32xf32>
    %174 = vector.extract_strided_slice %154 {offsets = [0, 64], sizes = [8, 32], strides = [1, 1]} : vector<8x128xf32> to vector<8x32xf32>
    %175 = math.tanh %174 : vector<8x32xf32>
    %176 = vector.extract_strided_slice %154 {offsets = [0, 96], sizes = [8, 32], strides = [1, 1]} : vector<8x128xf32> to vector<8x32xf32>
    %cst_63 = arith.constant 5.000000e-01 : f32
    %177 = vector.broadcast %cst_63 : f32 to vector<8x32xf32>
    %178 = arith.mulf %177, %176 : vector<8x32xf32>
    %179 = math.tanh %178 : vector<8x32xf32>
    %cst_64 = arith.constant 5.000000e-01 : f32
    %180 = vector.broadcast %cst_64 : f32 to vector<8x32xf32>
    %181 = arith.mulf %180, %179 : vector<8x32xf32>
    %cst_65 = arith.constant 5.000000e-01 : f32
    %182 = vector.broadcast %cst_65 : f32 to vector<8x32xf32>
    %183 = arith.addf %181, %182 : vector<8x32xf32>
    %184 = arith.mulf %173, %116 : vector<8x32xf32>
    %185 = arith.mulf %165, %175 : vector<8x32xf32>
    %186 = arith.addf %184, %185 : vector<8x32xf32>
    %187 = math.tanh %186 : vector<8x32xf32>
    %188 = arith.mulf %183, %187 : vector<8x32xf32>
    %189 = vector.extract_strided_slice %157 {offsets = [0, 0], sizes = [8, 32], strides = [1, 1]} : vector<8x128xf32> to vector<8x32xf32>
    %cst_66 = arith.constant 5.000000e-01 : f32
    %190 = vector.broadcast %cst_66 : f32 to vector<8x32xf32>
    %191 = arith.mulf %190, %189 : vector<8x32xf32>
    %192 = math.tanh %191 : vector<8x32xf32>
    %cst_67 = arith.constant 5.000000e-01 : f32
    %193 = vector.broadcast %cst_67 : f32 to vector<8x32xf32>
    %194 = arith.mulf %193, %192 : vector<8x32xf32>
    %cst_68 = arith.constant 5.000000e-01 : f32
    %195 = vector.broadcast %cst_68 : f32 to vector<8x32xf32>
    %196 = arith.addf %194, %195 : vector<8x32xf32>
    %197 = vector.extract_strided_slice %157 {offsets = [0, 32], sizes = [8, 32], strides = [1, 1]} : vector<8x128xf32> to vector<8x32xf32>
    %cst_69 = arith.constant 5.000000e-01 : f32
    %198 = vector.broadcast %cst_69 : f32 to vector<8x32xf32>
    %199 = arith.mulf %198, %197 : vector<8x32xf32>
    %200 = math.tanh %199 : vector<8x32xf32>
    %cst_70 = arith.constant 5.000000e-01 : f32
    %201 = vector.broadcast %cst_70 : f32 to vector<8x32xf32>
    %202 = arith.mulf %201, %200 : vector<8x32xf32>
    %cst_71 = arith.constant 5.000000e-01 : f32
    %203 = vector.broadcast %cst_71 : f32 to vector<8x32xf32>
    %204 = arith.addf %202, %203 : vector<8x32xf32>
    %205 = vector.extract_strided_slice %157 {offsets = [0, 64], sizes = [8, 32], strides = [1, 1]} : vector<8x128xf32> to vector<8x32xf32>
    %206 = math.tanh %205 : vector<8x32xf32>
    %207 = vector.extract_strided_slice %157 {offsets = [0, 96], sizes = [8, 32], strides = [1, 1]} : vector<8x128xf32> to vector<8x32xf32>
    %cst_72 = arith.constant 5.000000e-01 : f32
    %208 = vector.broadcast %cst_72 : f32 to vector<8x32xf32>
    %209 = arith.mulf %208, %207 : vector<8x32xf32>
    %210 = math.tanh %209 : vector<8x32xf32>
    %cst_73 = arith.constant 5.000000e-01 : f32
    %211 = vector.broadcast %cst_73 : f32 to vector<8x32xf32>
    %212 = arith.mulf %211, %210 : vector<8x32xf32>
    %cst_74 = arith.constant 5.000000e-01 : f32
    %213 = vector.broadcast %cst_74 : f32 to vector<8x32xf32>
    %214 = arith.addf %212, %213 : vector<8x32xf32>
    %215 = arith.mulf %204, %147 : vector<8x32xf32>
    %216 = arith.mulf %196, %206 : vector<8x32xf32>
    %217 = arith.addf %215, %216 : vector<8x32xf32>
    %218 = math.tanh %217 : vector<8x32xf32>
    %219 = arith.mulf %214, %218 : vector<8x32xf32>
    %220 = tpu.concatenate %188, %219 in 1 : vector<8x32xf32>, vector<8x32xf32> -> vector<8x64xf32>
    %cst_75 = arith.constant dense<0.000000e+00> : vector<8x256xf32>
    %221 = tpu.matmul %220, %8, %cst_75 {dimension_numbers = #tpu.dot_dimension_numbers<[1], [0], [0], [1], [0, 0, 1, 1], [], []>} : vector<8x64xf32>, vector<64x256xf32>, vector<8x256xf32> -> vector<8x256xf32>
    %c24 = arith.constant 24 : index
    %c0_76 = arith.constant 0 : index
    %222 = vector.load %arg10[%c24, %c0_76] : memref<64x256xf32, #tpu.memory_space<vmem>>, vector<8x128xf32>
    %223 = vector.extract_strided_slice %221 {offsets = [0, 0], sizes = [8, 128], strides = [1, 1]} : vector<8x256xf32> to vector<8x128xf32>
    %224 = arith.addf %222, %223 : vector<8x128xf32>
    %c32 = arith.constant 32 : index
    %c128_77 = arith.constant 128 : index
    %225 = vector.load %arg10[%c32, %c128_77] : memref<64x256xf32, #tpu.memory_space<vmem>>, vector<8x128xf32>
    %226 = vector.extract_strided_slice %221 {offsets = [0, 128], sizes = [8, 128], strides = [1, 1]} : vector<8x256xf32> to vector<8x128xf32>
    %227 = arith.addf %225, %226 : vector<8x128xf32>
    %228 = vector.extract_strided_slice %224 {offsets = [0, 0], sizes = [8, 32], strides = [1, 1]} : vector<8x128xf32> to vector<8x32xf32>
    %cst_78 = arith.constant 5.000000e-01 : f32
    %229 = vector.broadcast %cst_78 : f32 to vector<8x32xf32>
    %230 = arith.mulf %229, %228 : vector<8x32xf32>
    %231 = math.tanh %230 : vector<8x32xf32>
    %cst_79 = arith.constant 5.000000e-01 : f32
    %232 = vector.broadcast %cst_79 : f32 to vector<8x32xf32>
    %233 = arith.mulf %232, %231 : vector<8x32xf32>
    %cst_80 = arith.constant 5.000000e-01 : f32
    %234 = vector.broadcast %cst_80 : f32 to vector<8x32xf32>
    %235 = arith.addf %233, %234 : vector<8x32xf32>
    %236 = vector.extract_strided_slice %224 {offsets = [0, 32], sizes = [8, 32], strides = [1, 1]} : vector<8x128xf32> to vector<8x32xf32>
    %cst_81 = arith.constant 5.000000e-01 : f32
    %237 = vector.broadcast %cst_81 : f32 to vector<8x32xf32>
    %238 = arith.mulf %237, %236 : vector<8x32xf32>
    %239 = math.tanh %238 : vector<8x32xf32>
    %cst_82 = arith.constant 5.000000e-01 : f32
    %240 = vector.broadcast %cst_82 : f32 to vector<8x32xf32>
    %241 = arith.mulf %240, %239 : vector<8x32xf32>
    %cst_83 = arith.constant 5.000000e-01 : f32
    %242 = vector.broadcast %cst_83 : f32 to vector<8x32xf32>
    %243 = arith.addf %241, %242 : vector<8x32xf32>
    %244 = vector.extract_strided_slice %224 {offsets = [0, 64], sizes = [8, 32], strides = [1, 1]} : vector<8x128xf32> to vector<8x32xf32>
    %245 = math.tanh %244 : vector<8x32xf32>
    %246 = vector.extract_strided_slice %224 {offsets = [0, 96], sizes = [8, 32], strides = [1, 1]} : vector<8x128xf32> to vector<8x32xf32>
    %cst_84 = arith.constant 5.000000e-01 : f32
    %247 = vector.broadcast %cst_84 : f32 to vector<8x32xf32>
    %248 = arith.mulf %247, %246 : vector<8x32xf32>
    %249 = math.tanh %248 : vector<8x32xf32>
    %cst_85 = arith.constant 5.000000e-01 : f32
    %250 = vector.broadcast %cst_85 : f32 to vector<8x32xf32>
    %251 = arith.mulf %250, %249 : vector<8x32xf32>
    %cst_86 = arith.constant 5.000000e-01 : f32
    %252 = vector.broadcast %cst_86 : f32 to vector<8x32xf32>
    %253 = arith.addf %251, %252 : vector<8x32xf32>
    %254 = arith.mulf %243, %186 : vector<8x32xf32>
    %255 = arith.mulf %235, %245 : vector<8x32xf32>
    %256 = arith.addf %254, %255 : vector<8x32xf32>
    %257 = math.tanh %256 : vector<8x32xf32>
    %258 = arith.mulf %253, %257 : vector<8x32xf32>
    %259 = vector.extract_strided_slice %227 {offsets = [0, 0], sizes = [8, 32], strides = [1, 1]} : vector<8x128xf32> to vector<8x32xf32>
    %cst_87 = arith.constant 5.000000e-01 : f32
    %260 = vector.broadcast %cst_87 : f32 to vector<8x32xf32>
    %261 = arith.mulf %260, %259 : vector<8x32xf32>
    %262 = math.tanh %261 : vector<8x32xf32>
    %cst_88 = arith.constant 5.000000e-01 : f32
    %263 = vector.broadcast %cst_88 : f32 to vector<8x32xf32>
    %264 = arith.mulf %263, %262 : vector<8x32xf32>
    %cst_89 = arith.constant 5.000000e-01 : f32
    %265 = vector.broadcast %cst_89 : f32 to vector<8x32xf32>
    %266 = arith.addf %264, %265 : vector<8x32xf32>
    %267 = vector.extract_strided_slice %227 {offsets = [0, 32], sizes = [8, 32], strides = [1, 1]} : vector<8x128xf32> to vector<8x32xf32>
    %cst_90 = arith.constant 5.000000e-01 : f32
    %268 = vector.broadcast %cst_90 : f32 to vector<8x32xf32>
    %269 = arith.mulf %268, %267 : vector<8x32xf32>
    %270 = math.tanh %269 : vector<8x32xf32>
    %cst_91 = arith.constant 5.000000e-01 : f32
    %271 = vector.broadcast %cst_91 : f32 to vector<8x32xf32>
    %272 = arith.mulf %271, %270 : vector<8x32xf32>
    %cst_92 = arith.constant 5.000000e-01 : f32
    %273 = vector.broadcast %cst_92 : f32 to vector<8x32xf32>
    %274 = arith.addf %272, %273 : vector<8x32xf32>
    %275 = vector.extract_strided_slice %227 {offsets = [0, 64], sizes = [8, 32], strides = [1, 1]} : vector<8x128xf32> to vector<8x32xf32>
    %276 = math.tanh %275 : vector<8x32xf32>
    %277 = vector.extract_strided_slice %227 {offsets = [0, 96], sizes = [8, 32], strides = [1, 1]} : vector<8x128xf32> to vector<8x32xf32>
    %cst_93 = arith.constant 5.000000e-01 : f32
    %278 = vector.broadcast %cst_93 : f32 to vector<8x32xf32>
    %279 = arith.mulf %278, %277 : vector<8x32xf32>
    %280 = math.tanh %279 : vector<8x32xf32>
    %cst_94 = arith.constant 5.000000e-01 : f32
    %281 = vector.broadcast %cst_94 : f32 to vector<8x32xf32>
    %282 = arith.mulf %281, %280 : vector<8x32xf32>
    %cst_95 = arith.constant 5.000000e-01 : f32
    %283 = vector.broadcast %cst_95 : f32 to vector<8x32xf32>
    %284 = arith.addf %282, %283 : vector<8x32xf32>
    %285 = arith.mulf %274, %217 : vector<8x32xf32>
    %286 = arith.mulf %266, %276 : vector<8x32xf32>
    %287 = arith.addf %285, %286 : vector<8x32xf32>
    %288 = math.tanh %287 : vector<8x32xf32>
    %289 = arith.mulf %284, %288 : vector<8x32xf32>
    %290 = tpu.concatenate %258, %289 in 1 : vector<8x32xf32>, vector<8x32xf32> -> vector<8x64xf32>
    %cst_96 = arith.constant dense<0.000000e+00> : vector<8x256xf32>
    %291 = tpu.matmul %290, %8, %cst_96 {dimension_numbers = #tpu.dot_dimension_numbers<[1], [0], [0], [1], [0, 0, 1, 1], [], []>} : vector<8x64xf32>, vector<64x256xf32>, vector<8x256xf32> -> vector<8x256xf32>
    %c32_97 = arith.constant 32 : index
    %c0_98 = arith.constant 0 : index
    %292 = vector.load %arg10[%c32_97, %c0_98] : memref<64x256xf32, #tpu.memory_space<vmem>>, vector<8x128xf32>
    %293 = vector.extract_strided_slice %291 {offsets = [0, 0], sizes = [8, 128], strides = [1, 1]} : vector<8x256xf32> to vector<8x128xf32>
    %294 = arith.addf %292, %293 : vector<8x128xf32>
    %c24_99 = arith.constant 24 : index
    %c128_100 = arith.constant 128 : index
    %295 = vector.load %arg10[%c24_99, %c128_100] : memref<64x256xf32, #tpu.memory_space<vmem>>, vector<8x128xf32>
    %296 = vector.extract_strided_slice %291 {offsets = [0, 128], sizes = [8, 128], strides = [1, 1]} : vector<8x256xf32> to vector<8x128xf32>
    %297 = arith.addf %295, %296 : vector<8x128xf32>
    %298 = vector.extract_strided_slice %294 {offsets = [0, 0], sizes = [8, 32], strides = [1, 1]} : vector<8x128xf32> to vector<8x32xf32>
    %cst_101 = arith.constant 5.000000e-01 : f32
    %299 = vector.broadcast %cst_101 : f32 to vector<8x32xf32>
    %300 = arith.mulf %299, %298 : vector<8x32xf32>
    %301 = math.tanh %300 : vector<8x32xf32>
    %cst_102 = arith.constant 5.000000e-01 : f32
    %302 = vector.broadcast %cst_102 : f32 to vector<8x32xf32>
    %303 = arith.mulf %302, %301 : vector<8x32xf32>
    %cst_103 = arith.constant 5.000000e-01 : f32
    %304 = vector.broadcast %cst_103 : f32 to vector<8x32xf32>
    %305 = arith.addf %303, %304 : vector<8x32xf32>
    %306 = vector.extract_strided_slice %294 {offsets = [0, 32], sizes = [8, 32], strides = [1, 1]} : vector<8x128xf32> to vector<8x32xf32>
    %cst_104 = arith.constant 5.000000e-01 : f32
    %307 = vector.broadcast %cst_104 : f32 to vector<8x32xf32>
    %308 = arith.mulf %307, %306 : vector<8x32xf32>
    %309 = math.tanh %308 : vector<8x32xf32>
    %cst_105 = arith.constant 5.000000e-01 : f32
    %310 = vector.broadcast %cst_105 : f32 to vector<8x32xf32>
    %311 = arith.mulf %310, %309 : vector<8x32xf32>
    %cst_106 = arith.constant 5.000000e-01 : f32
    %312 = vector.broadcast %cst_106 : f32 to vector<8x32xf32>
    %313 = arith.addf %311, %312 : vector<8x32xf32>
    %314 = vector.extract_strided_slice %294 {offsets = [0, 64], sizes = [8, 32], strides = [1, 1]} : vector<8x128xf32> to vector<8x32xf32>
    %315 = math.tanh %314 : vector<8x32xf32>
    %316 = vector.extract_strided_slice %294 {offsets = [0, 96], sizes = [8, 32], strides = [1, 1]} : vector<8x128xf32> to vector<8x32xf32>
    %cst_107 = arith.constant 5.000000e-01 : f32
    %317 = vector.broadcast %cst_107 : f32 to vector<8x32xf32>
    %318 = arith.mulf %317, %316 : vector<8x32xf32>
    %319 = math.tanh %318 : vector<8x32xf32>
    %cst_108 = arith.constant 5.000000e-01 : f32
    %320 = vector.broadcast %cst_108 : f32 to vector<8x32xf32>
    %321 = arith.mulf %320, %319 : vector<8x32xf32>
    %cst_109 = arith.constant 5.000000e-01 : f32
    %322 = vector.broadcast %cst_109 : f32 to vector<8x32xf32>
    %323 = arith.addf %321, %322 : vector<8x32xf32>
    %324 = arith.mulf %313, %256 : vector<8x32xf32>
    %325 = arith.mulf %305, %315 : vector<8x32xf32>
    %326 = arith.addf %324, %325 : vector<8x32xf32>
    %327 = math.tanh %326 : vector<8x32xf32>
    %328 = arith.mulf %323, %327 : vector<8x32xf32>
    %329 = vector.extract_strided_slice %297 {offsets = [0, 0], sizes = [8, 32], strides = [1, 1]} : vector<8x128xf32> to vector<8x32xf32>
    %cst_110 = arith.constant 5.000000e-01 : f32
    %330 = vector.broadcast %cst_110 : f32 to vector<8x32xf32>
    %331 = arith.mulf %330, %329 : vector<8x32xf32>
    %332 = math.tanh %331 : vector<8x32xf32>
    %cst_111 = arith.constant 5.000000e-01 : f32
    %333 = vector.broadcast %cst_111 : f32 to vector<8x32xf32>
    %334 = arith.mulf %333, %332 : vector<8x32xf32>
    %cst_112 = arith.constant 5.000000e-01 : f32
    %335 = vector.broadcast %cst_112 : f32 to vector<8x32xf32>
    %336 = arith.addf %334, %335 : vector<8x32xf32>
    %337 = vector.extract_strided_slice %297 {offsets = [0, 32], sizes = [8, 32], strides = [1, 1]} : vector<8x128xf32> to vector<8x32xf32>
    %cst_113 = arith.constant 5.000000e-01 : f32
    %338 = vector.broadcast %cst_113 : f32 to vector<8x32xf32>
    %339 = arith.mulf %338, %337 : vector<8x32xf32>
    %340 = math.tanh %339 : vector<8x32xf32>
    %cst_114 = arith.constant 5.000000e-01 : f32
    %341 = vector.broadcast %cst_114 : f32 to vector<8x32xf32>
    %342 = arith.mulf %341, %340 : vector<8x32xf32>
    %cst_115 = arith.constant 5.000000e-01 : f32
    %343 = vector.broadcast %cst_115 : f32 to vector<8x32xf32>
    %344 = arith.addf %342, %343 : vector<8x32xf32>
    %345 = vector.extract_strided_slice %297 {offsets = [0, 64], sizes = [8, 32], strides = [1, 1]} : vector<8x128xf32> to vector<8x32xf32>
    %346 = math.tanh %345 : vector<8x32xf32>
    %347 = vector.extract_strided_slice %297 {offsets = [0, 96], sizes = [8, 32], strides = [1, 1]} : vector<8x128xf32> to vector<8x32xf32>
    %cst_116 = arith.constant 5.000000e-01 : f32
    %348 = vector.broadcast %cst_116 : f32 to vector<8x32xf32>
    %349 = arith.mulf %348, %347 : vector<8x32xf32>
    %350 = math.tanh %349 : vector<8x32xf32>
    %cst_117 = arith.constant 5.000000e-01 : f32
    %351 = vector.broadcast %cst_117 : f32 to vector<8x32xf32>
    %352 = arith.mulf %351, %350 : vector<8x32xf32>
    %cst_118 = arith.constant 5.000000e-01 : f32
    %353 = vector.broadcast %cst_118 : f32 to vector<8x32xf32>
    %354 = arith.addf %352, %353 : vector<8x32xf32>
    %355 = arith.mulf %344, %287 : vector<8x32xf32>
    %356 = arith.mulf %336, %346 : vector<8x32xf32>
    %357 = arith.addf %355, %356 : vector<8x32xf32>
    %358 = math.tanh %357 : vector<8x32xf32>
    %359 = arith.mulf %354, %358 : vector<8x32xf32>
    %360 = tpu.concatenate %328, %359 in 1 : vector<8x32xf32>, vector<8x32xf32> -> vector<8x64xf32>
    %cst_119 = arith.constant dense<0.000000e+00> : vector<8x256xf32>
    %361 = tpu.matmul %360, %8, %cst_119 {dimension_numbers = #tpu.dot_dimension_numbers<[1], [0], [0], [1], [0, 0, 1, 1], [], []>} : vector<8x64xf32>, vector<64x256xf32>, vector<8x256xf32> -> vector<8x256xf32>
    %c40_120 = arith.constant 40 : index
    %c0_121 = arith.constant 0 : index
    %362 = vector.load %arg10[%c40_120, %c0_121] : memref<64x256xf32, #tpu.memory_space<vmem>>, vector<8x128xf32>
    %363 = vector.extract_strided_slice %361 {offsets = [0, 0], sizes = [8, 128], strides = [1, 1]} : vector<8x256xf32> to vector<8x128xf32>
    %364 = arith.addf %362, %363 : vector<8x128xf32>
    %c16_122 = arith.constant 16 : index
    %c128_123 = arith.constant 128 : index
    %365 = vector.load %arg10[%c16_122, %c128_123] : memref<64x256xf32, #tpu.memory_space<vmem>>, vector<8x128xf32>
    %366 = vector.extract_strided_slice %361 {offsets = [0, 128], sizes = [8, 128], strides = [1, 1]} : vector<8x256xf32> to vector<8x128xf32>
    %367 = arith.addf %365, %366 : vector<8x128xf32>
    %368 = vector.extract_strided_slice %364 {offsets = [0, 0], sizes = [8, 32], strides = [1, 1]} : vector<8x128xf32> to vector<8x32xf32>
    %cst_124 = arith.constant 5.000000e-01 : f32
    %369 = vector.broadcast %cst_124 : f32 to vector<8x32xf32>
    %370 = arith.mulf %369, %368 : vector<8x32xf32>
    %371 = math.tanh %370 : vector<8x32xf32>
    %cst_125 = arith.constant 5.000000e-01 : f32
    %372 = vector.broadcast %cst_125 : f32 to vector<8x32xf32>
    %373 = arith.mulf %372, %371 : vector<8x32xf32>
    %cst_126 = arith.constant 5.000000e-01 : f32
    %374 = vector.broadcast %cst_126 : f32 to vector<8x32xf32>
    %375 = arith.addf %373, %374 : vector<8x32xf32>
    %376 = vector.extract_strided_slice %364 {offsets = [0, 32], sizes = [8, 32], strides = [1, 1]} : vector<8x128xf32> to vector<8x32xf32>
    %cst_127 = arith.constant 5.000000e-01 : f32
    %377 = vector.broadcast %cst_127 : f32 to vector<8x32xf32>
    %378 = arith.mulf %377, %376 : vector<8x32xf32>
    %379 = math.tanh %378 : vector<8x32xf32>
    %cst_128 = arith.constant 5.000000e-01 : f32
    %380 = vector.broadcast %cst_128 : f32 to vector<8x32xf32>
    %381 = arith.mulf %380, %379 : vector<8x32xf32>
    %cst_129 = arith.constant 5.000000e-01 : f32
    %382 = vector.broadcast %cst_129 : f32 to vector<8x32xf32>
    %383 = arith.addf %381, %382 : vector<8x32xf32>
    %384 = vector.extract_strided_slice %364 {offsets = [0, 64], sizes = [8, 32], strides = [1, 1]} : vector<8x128xf32> to vector<8x32xf32>
    %385 = math.tanh %384 : vector<8x32xf32>
    %386 = vector.extract_strided_slice %364 {offsets = [0, 96], sizes = [8, 32], strides = [1, 1]} : vector<8x128xf32> to vector<8x32xf32>
    %cst_130 = arith.constant 5.000000e-01 : f32
    %387 = vector.broadcast %cst_130 : f32 to vector<8x32xf32>
    %388 = arith.mulf %387, %386 : vector<8x32xf32>
    %389 = math.tanh %388 : vector<8x32xf32>
    %cst_131 = arith.constant 5.000000e-01 : f32
    %390 = vector.broadcast %cst_131 : f32 to vector<8x32xf32>
    %391 = arith.mulf %390, %389 : vector<8x32xf32>
    %cst_132 = arith.constant 5.000000e-01 : f32
    %392 = vector.broadcast %cst_132 : f32 to vector<8x32xf32>
    %393 = arith.addf %391, %392 : vector<8x32xf32>
    %394 = arith.mulf %383, %326 : vector<8x32xf32>
    %395 = arith.mulf %375, %385 : vector<8x32xf32>
    %396 = arith.addf %394, %395 : vector<8x32xf32>
    %397 = math.tanh %396 : vector<8x32xf32>
    %398 = arith.mulf %393, %397 : vector<8x32xf32>
    %399 = vector.extract_strided_slice %367 {offsets = [0, 0], sizes = [8, 32], strides = [1, 1]} : vector<8x128xf32> to vector<8x32xf32>
    %cst_133 = arith.constant 5.000000e-01 : f32
    %400 = vector.broadcast %cst_133 : f32 to vector<8x32xf32>
    %401 = arith.mulf %400, %399 : vector<8x32xf32>
    %402 = math.tanh %401 : vector<8x32xf32>
    %cst_134 = arith.constant 5.000000e-01 : f32
    %403 = vector.broadcast %cst_134 : f32 to vector<8x32xf32>
    %404 = arith.mulf %403, %402 : vector<8x32xf32>
    %cst_135 = arith.constant 5.000000e-01 : f32
    %405 = vector.broadcast %cst_135 : f32 to vector<8x32xf32>
    %406 = arith.addf %404, %405 : vector<8x32xf32>
    %407 = vector.extract_strided_slice %367 {offsets = [0, 32], sizes = [8, 32], strides = [1, 1]} : vector<8x128xf32> to vector<8x32xf32>
    %cst_136 = arith.constant 5.000000e-01 : f32
    %408 = vector.broadcast %cst_136 : f32 to vector<8x32xf32>
    %409 = arith.mulf %408, %407 : vector<8x32xf32>
    %410 = math.tanh %409 : vector<8x32xf32>
    %cst_137 = arith.constant 5.000000e-01 : f32
    %411 = vector.broadcast %cst_137 : f32 to vector<8x32xf32>
    %412 = arith.mulf %411, %410 : vector<8x32xf32>
    %cst_138 = arith.constant 5.000000e-01 : f32
    %413 = vector.broadcast %cst_138 : f32 to vector<8x32xf32>
    %414 = arith.addf %412, %413 : vector<8x32xf32>
    %415 = vector.extract_strided_slice %367 {offsets = [0, 64], sizes = [8, 32], strides = [1, 1]} : vector<8x128xf32> to vector<8x32xf32>
    %416 = math.tanh %415 : vector<8x32xf32>
    %417 = vector.extract_strided_slice %367 {offsets = [0, 96], sizes = [8, 32], strides = [1, 1]} : vector<8x128xf32> to vector<8x32xf32>
    %cst_139 = arith.constant 5.000000e-01 : f32
    %418 = vector.broadcast %cst_139 : f32 to vector<8x32xf32>
    %419 = arith.mulf %418, %417 : vector<8x32xf32>
    %420 = math.tanh %419 : vector<8x32xf32>
    %cst_140 = arith.constant 5.000000e-01 : f32
    %421 = vector.broadcast %cst_140 : f32 to vector<8x32xf32>
    %422 = arith.mulf %421, %420 : vector<8x32xf32>
    %cst_141 = arith.constant 5.000000e-01 : f32
    %423 = vector.broadcast %cst_141 : f32 to vector<8x32xf32>
    %424 = arith.addf %422, %423 : vector<8x32xf32>
    %425 = arith.mulf %414, %357 : vector<8x32xf32>
    %426 = arith.mulf %406, %416 : vector<8x32xf32>
    %427 = arith.addf %425, %426 : vector<8x32xf32>
    %428 = math.tanh %427 : vector<8x32xf32>
    %429 = arith.mulf %424, %428 : vector<8x32xf32>
    %430 = tpu.concatenate %398, %429 in 1 : vector<8x32xf32>, vector<8x32xf32> -> vector<8x64xf32>
    %cst_142 = arith.constant dense<0.000000e+00> : vector<8x256xf32>
    %431 = tpu.matmul %430, %8, %cst_142 {dimension_numbers = #tpu.dot_dimension_numbers<[1], [0], [0], [1], [0, 0, 1, 1], [], []>} : vector<8x64xf32>, vector<64x256xf32>, vector<8x256xf32> -> vector<8x256xf32>
    %c48_143 = arith.constant 48 : index
    %c0_144 = arith.constant 0 : index
    %432 = vector.load %arg10[%c48_143, %c0_144] : memref<64x256xf32, #tpu.memory_space<vmem>>, vector<8x128xf32>
    %433 = vector.extract_strided_slice %431 {offsets = [0, 0], sizes = [8, 128], strides = [1, 1]} : vector<8x256xf32> to vector<8x128xf32>
    %434 = arith.addf %432, %433 : vector<8x128xf32>
    %c8_145 = arith.constant 8 : index
    %c128_146 = arith.constant 128 : index
    %435 = vector.load %arg10[%c8_145, %c128_146] : memref<64x256xf32, #tpu.memory_space<vmem>>, vector<8x128xf32>
    %436 = vector.extract_strided_slice %431 {offsets = [0, 128], sizes = [8, 128], strides = [1, 1]} : vector<8x256xf32> to vector<8x128xf32>
    %437 = arith.addf %435, %436 : vector<8x128xf32>
    %438 = vector.extract_strided_slice %434 {offsets = [0, 0], sizes = [8, 32], strides = [1, 1]} : vector<8x128xf32> to vector<8x32xf32>
    %cst_147 = arith.constant 5.000000e-01 : f32
    %439 = vector.broadcast %cst_147 : f32 to vector<8x32xf32>
    %440 = arith.mulf %439, %438 : vector<8x32xf32>
    %441 = math.tanh %440 : vector<8x32xf32>
    %cst_148 = arith.constant 5.000000e-01 : f32
    %442 = vector.broadcast %cst_148 : f32 to vector<8x32xf32>
    %443 = arith.mulf %442, %441 : vector<8x32xf32>
    %cst_149 = arith.constant 5.000000e-01 : f32
    %444 = vector.broadcast %cst_149 : f32 to vector<8x32xf32>
    %445 = arith.addf %443, %444 : vector<8x32xf32>
    %446 = vector.extract_strided_slice %434 {offsets = [0, 32], sizes = [8, 32], strides = [1, 1]} : vector<8x128xf32> to vector<8x32xf32>
    %cst_150 = arith.constant 5.000000e-01 : f32
    %447 = vector.broadcast %cst_150 : f32 to vector<8x32xf32>
    %448 = arith.mulf %447, %446 : vector<8x32xf32>
    %449 = math.tanh %448 : vector<8x32xf32>
    %cst_151 = arith.constant 5.000000e-01 : f32
    %450 = vector.broadcast %cst_151 : f32 to vector<8x32xf32>
    %451 = arith.mulf %450, %449 : vector<8x32xf32>
    %cst_152 = arith.constant 5.000000e-01 : f32
    %452 = vector.broadcast %cst_152 : f32 to vector<8x32xf32>
    %453 = arith.addf %451, %452 : vector<8x32xf32>
    %454 = vector.extract_strided_slice %434 {offsets = [0, 64], sizes = [8, 32], strides = [1, 1]} : vector<8x128xf32> to vector<8x32xf32>
    %455 = math.tanh %454 : vector<8x32xf32>
    %456 = vector.extract_strided_slice %434 {offsets = [0, 96], sizes = [8, 32], strides = [1, 1]} : vector<8x128xf32> to vector<8x32xf32>
    %cst_153 = arith.constant 5.000000e-01 : f32
    %457 = vector.broadcast %cst_153 : f32 to vector<8x32xf32>
    %458 = arith.mulf %457, %456 : vector<8x32xf32>
    %459 = math.tanh %458 : vector<8x32xf32>
    %cst_154 = arith.constant 5.000000e-01 : f32
    %460 = vector.broadcast %cst_154 : f32 to vector<8x32xf32>
    %461 = arith.mulf %460, %459 : vector<8x32xf32>
    %cst_155 = arith.constant 5.000000e-01 : f32
    %462 = vector.broadcast %cst_155 : f32 to vector<8x32xf32>
    %463 = arith.addf %461, %462 : vector<8x32xf32>
    %464 = arith.mulf %453, %396 : vector<8x32xf32>
    %465 = arith.mulf %445, %455 : vector<8x32xf32>
    %466 = arith.addf %464, %465 : vector<8x32xf32>
    %467 = math.tanh %466 : vector<8x32xf32>
    %468 = arith.mulf %463, %467 : vector<8x32xf32>
    %469 = vector.extract_strided_slice %437 {offsets = [0, 0], sizes = [8, 32], strides = [1, 1]} : vector<8x128xf32> to vector<8x32xf32>
    %cst_156 = arith.constant 5.000000e-01 : f32
    %470 = vector.broadcast %cst_156 : f32 to vector<8x32xf32>
    %471 = arith.mulf %470, %469 : vector<8x32xf32>
    %472 = math.tanh %471 : vector<8x32xf32>
    %cst_157 = arith.constant 5.000000e-01 : f32
    %473 = vector.broadcast %cst_157 : f32 to vector<8x32xf32>
    %474 = arith.mulf %473, %472 : vector<8x32xf32>
    %cst_158 = arith.constant 5.000000e-01 : f32
    %475 = vector.broadcast %cst_158 : f32 to vector<8x32xf32>
    %476 = arith.addf %474, %475 : vector<8x32xf32>
    %477 = vector.extract_strided_slice %437 {offsets = [0, 32], sizes = [8, 32], strides = [1, 1]} : vector<8x128xf32> to vector<8x32xf32>
    %cst_159 = arith.constant 5.000000e-01 : f32
    %478 = vector.broadcast %cst_159 : f32 to vector<8x32xf32>
    %479 = arith.mulf %478, %477 : vector<8x32xf32>
    %480 = math.tanh %479 : vector<8x32xf32>
    %cst_160 = arith.constant 5.000000e-01 : f32
    %481 = vector.broadcast %cst_160 : f32 to vector<8x32xf32>
    %482 = arith.mulf %481, %480 : vector<8x32xf32>
    %cst_161 = arith.constant 5.000000e-01 : f32
    %483 = vector.broadcast %cst_161 : f32 to vector<8x32xf32>
    %484 = arith.addf %482, %483 : vector<8x32xf32>
    %485 = vector.extract_strided_slice %437 {offsets = [0, 64], sizes = [8, 32], strides = [1, 1]} : vector<8x128xf32> to vector<8x32xf32>
    %486 = math.tanh %485 : vector<8x32xf32>
    %487 = vector.extract_strided_slice %437 {offsets = [0, 96], sizes = [8, 32], strides = [1, 1]} : vector<8x128xf32> to vector<8x32xf32>
    %cst_162 = arith.constant 5.000000e-01 : f32
    %488 = vector.broadcast %cst_162 : f32 to vector<8x32xf32>
    %489 = arith.mulf %488, %487 : vector<8x32xf32>
    %490 = math.tanh %489 : vector<8x32xf32>
    %cst_163 = arith.constant 5.000000e-01 : f32
    %491 = vector.broadcast %cst_163 : f32 to vector<8x32xf32>
    %492 = arith.mulf %491, %490 : vector<8x32xf32>
    %cst_164 = arith.constant 5.000000e-01 : f32
    %493 = vector.broadcast %cst_164 : f32 to vector<8x32xf32>
    %494 = arith.addf %492, %493 : vector<8x32xf32>
    %495 = arith.mulf %484, %427 : vector<8x32xf32>
    %496 = arith.mulf %476, %486 : vector<8x32xf32>
    %497 = arith.addf %495, %496 : vector<8x32xf32>
    %498 = math.tanh %497 : vector<8x32xf32>
    %499 = arith.mulf %494, %498 : vector<8x32xf32>
    %500 = tpu.concatenate %468, %499 in 1 : vector<8x32xf32>, vector<8x32xf32> -> vector<8x64xf32>
    %cst_165 = arith.constant dense<0.000000e+00> : vector<8x256xf32>
    %501 = tpu.matmul %500, %8, %cst_165 {dimension_numbers = #tpu.dot_dimension_numbers<[1], [0], [0], [1], [0, 0, 1, 1], [], []>} : vector<8x64xf32>, vector<64x256xf32>, vector<8x256xf32> -> vector<8x256xf32>
    %c56_166 = arith.constant 56 : index
    %c0_167 = arith.constant 0 : index
    %502 = vector.load %arg10[%c56_166, %c0_167] : memref<64x256xf32, #tpu.memory_space<vmem>>, vector<8x128xf32>
    %503 = vector.extract_strided_slice %501 {offsets = [0, 0], sizes = [8, 128], strides = [1, 1]} : vector<8x256xf32> to vector<8x128xf32>
    %504 = arith.addf %502, %503 : vector<8x128xf32>
    %c0_168 = arith.constant 0 : index
    %c128_169 = arith.constant 128 : index
    %505 = vector.load %arg10[%c0_168, %c128_169] : memref<64x256xf32, #tpu.memory_space<vmem>>, vector<8x128xf32>
    %506 = vector.extract_strided_slice %501 {offsets = [0, 128], sizes = [8, 128], strides = [1, 1]} : vector<8x256xf32> to vector<8x128xf32>
    %507 = arith.addf %505, %506 : vector<8x128xf32>
    %508 = vector.extract_strided_slice %504 {offsets = [0, 0], sizes = [8, 32], strides = [1, 1]} : vector<8x128xf32> to vector<8x32xf32>
    %cst_170 = arith.constant 5.000000e-01 : f32
    %509 = vector.broadcast %cst_170 : f32 to vector<8x32xf32>
    %510 = arith.mulf %509, %508 : vector<8x32xf32>
    %511 = math.tanh %510 : vector<8x32xf32>
    %cst_171 = arith.constant 5.000000e-01 : f32
    %512 = vector.broadcast %cst_171 : f32 to vector<8x32xf32>
    %513 = arith.mulf %512, %511 : vector<8x32xf32>
    %cst_172 = arith.constant 5.000000e-01 : f32
    %514 = vector.broadcast %cst_172 : f32 to vector<8x32xf32>
    %515 = arith.addf %513, %514 : vector<8x32xf32>
    %516 = vector.extract_strided_slice %504 {offsets = [0, 32], sizes = [8, 32], strides = [1, 1]} : vector<8x128xf32> to vector<8x32xf32>
    %cst_173 = arith.constant 5.000000e-01 : f32
    %517 = vector.broadcast %cst_173 : f32 to vector<8x32xf32>
    %518 = arith.mulf %517, %516 : vector<8x32xf32>
    %519 = math.tanh %518 : vector<8x32xf32>
    %cst_174 = arith.constant 5.000000e-01 : f32
    %520 = vector.broadcast %cst_174 : f32 to vector<8x32xf32>
    %521 = arith.mulf %520, %519 : vector<8x32xf32>
    %cst_175 = arith.constant 5.000000e-01 : f32
    %522 = vector.broadcast %cst_175 : f32 to vector<8x32xf32>
    %523 = arith.addf %521, %522 : vector<8x32xf32>
    %524 = vector.extract_strided_slice %504 {offsets = [0, 64], sizes = [8, 32], strides = [1, 1]} : vector<8x128xf32> to vector<8x32xf32>
    %525 = math.tanh %524 : vector<8x32xf32>
    %526 = vector.extract_strided_slice %504 {offsets = [0, 96], sizes = [8, 32], strides = [1, 1]} : vector<8x128xf32> to vector<8x32xf32>
    %cst_176 = arith.constant 5.000000e-01 : f32
    %527 = vector.broadcast %cst_176 : f32 to vector<8x32xf32>
    %528 = arith.mulf %527, %526 : vector<8x32xf32>
    %529 = math.tanh %528 : vector<8x32xf32>
    %cst_177 = arith.constant 5.000000e-01 : f32
    %530 = vector.broadcast %cst_177 : f32 to vector<8x32xf32>
    %531 = arith.mulf %530, %529 : vector<8x32xf32>
    %cst_178 = arith.constant 5.000000e-01 : f32
    %532 = vector.broadcast %cst_178 : f32 to vector<8x32xf32>
    %533 = arith.addf %531, %532 : vector<8x32xf32>
    %534 = arith.mulf %523, %466 : vector<8x32xf32>
    %535 = arith.mulf %515, %525 : vector<8x32xf32>
    %536 = arith.addf %534, %535 : vector<8x32xf32>
    %537 = math.tanh %536 : vector<8x32xf32>
    %538 = arith.mulf %533, %537 : vector<8x32xf32>
    %539 = vector.extract_strided_slice %507 {offsets = [0, 0], sizes = [8, 32], strides = [1, 1]} : vector<8x128xf32> to vector<8x32xf32>
    %cst_179 = arith.constant 5.000000e-01 : f32
    %540 = vector.broadcast %cst_179 : f32 to vector<8x32xf32>
    %541 = arith.mulf %540, %539 : vector<8x32xf32>
    %542 = math.tanh %541 : vector<8x32xf32>
    %cst_180 = arith.constant 5.000000e-01 : f32
    %543 = vector.broadcast %cst_180 : f32 to vector<8x32xf32>
    %544 = arith.mulf %543, %542 : vector<8x32xf32>
    %cst_181 = arith.constant 5.000000e-01 : f32
    %545 = vector.broadcast %cst_181 : f32 to vector<8x32xf32>
    %546 = arith.addf %544, %545 : vector<8x32xf32>
    %547 = vector.extract_strided_slice %507 {offsets = [0, 32], sizes = [8, 32], strides = [1, 1]} : vector<8x128xf32> to vector<8x32xf32>
    %cst_182 = arith.constant 5.000000e-01 : f32
    %548 = vector.broadcast %cst_182 : f32 to vector<8x32xf32>
    %549 = arith.mulf %548, %547 : vector<8x32xf32>
    %550 = math.tanh %549 : vector<8x32xf32>
    %cst_183 = arith.constant 5.000000e-01 : f32
    %551 = vector.broadcast %cst_183 : f32 to vector<8x32xf32>
    %552 = arith.mulf %551, %550 : vector<8x32xf32>
    %cst_184 = arith.constant 5.000000e-01 : f32
    %553 = vector.broadcast %cst_184 : f32 to vector<8x32xf32>
    %554 = arith.addf %552, %553 : vector<8x32xf32>
    %555 = vector.extract_strided_slice %507 {offsets = [0, 64], sizes = [8, 32], strides = [1, 1]} : vector<8x128xf32> to vector<8x32xf32>
    %556 = math.tanh %555 : vector<8x32xf32>
    %557 = vector.extract_strided_slice %507 {offsets = [0, 96], sizes = [8, 32], strides = [1, 1]} : vector<8x128xf32> to vector<8x32xf32>
    %cst_185 = arith.constant 5.000000e-01 : f32
    %558 = vector.broadcast %cst_185 : f32 to vector<8x32xf32>
    %559 = arith.mulf %558, %557 : vector<8x32xf32>
    %560 = math.tanh %559 : vector<8x32xf32>
    %cst_186 = arith.constant 5.000000e-01 : f32
    %561 = vector.broadcast %cst_186 : f32 to vector<8x32xf32>
    %562 = arith.mulf %561, %560 : vector<8x32xf32>
    %cst_187 = arith.constant 5.000000e-01 : f32
    %563 = vector.broadcast %cst_187 : f32 to vector<8x32xf32>
    %564 = arith.addf %562, %563 : vector<8x32xf32>
    %565 = arith.mulf %554, %497 : vector<8x32xf32>
    %566 = arith.mulf %546, %556 : vector<8x32xf32>
    %567 = arith.addf %565, %566 : vector<8x32xf32>
    %568 = math.tanh %567 : vector<8x32xf32>
    %569 = arith.mulf %564, %568 : vector<8x32xf32>
    %570 = tpu.concatenate %48, %569 in 1 : vector<8x32xf32>, vector<8x32xf32> -> vector<8x64xf32>
    %571 = tpu.concatenate %118, %499 in 1 : vector<8x32xf32>, vector<8x32xf32> -> vector<8x64xf32>
    %572 = tpu.concatenate %188, %429 in 1 : vector<8x32xf32>, vector<8x32xf32> -> vector<8x64xf32>
    %573 = tpu.concatenate %258, %359 in 1 : vector<8x32xf32>, vector<8x32xf32> -> vector<8x64xf32>
    %574 = tpu.concatenate %328, %289 in 1 : vector<8x32xf32>, vector<8x32xf32> -> vector<8x64xf32>
    %575 = tpu.concatenate %398, %219 in 1 : vector<8x32xf32>, vector<8x32xf32> -> vector<8x64xf32>
    %576 = tpu.concatenate %468, %149 in 1 : vector<8x32xf32>, vector<8x32xf32> -> vector<8x64xf32>
    %577 = tpu.concatenate %538, %79 in 1 : vector<8x32xf32>, vector<8x32xf32> -> vector<8x64xf32>
    %578 = tpu.concatenate %570, %571, %572, %573, %574, %575, %576, %577 in 0 : vector<8x64xf32>, vector<8x64xf32>, vector<8x64xf32>, vector<8x64xf32>, vector<8x64xf32>, vector<8x64xf32>, vector<8x64xf32>, vector<8x64xf32> -> vector<64x64xf32>
    %c0_188 = arith.constant 0 : index
    %c0_189 = arith.constant 0 : index
    %579 = vector.load %arg5[%c0_188, %c0_189] : memref<64x1xf32, #tpu.memory_space<vmem>>, vector<64x1xf32>
    %cst_190 = arith.constant dense<0.000000e+00> : vector<64x1xf32>
    %580 = tpu.matmul %578, %579, %cst_190 {dimension_numbers = #tpu.dot_dimension_numbers<[1], [0], [0], [1], [0, 0, 1, 1], [], []>} : vector<64x64xf32>, vector<64x1xf32>, vector<64x1xf32> -> vector<64x1xf32>
    %c0_191 = arith.constant 0 : index
    %c0_192 = arith.constant 0 : index
    %581 = vector.load %arg6[%c0_191, %c0_192] : memref<1x1xf32, #tpu.memory_space<vmem>>, vector<1x1xf32>
    %582 = vector.broadcast %581 : vector<1x1xf32> to vector<64x1xf32>
    %583 = arith.addf %580, %582 : vector<64x1xf32>
    %584 = vector.shape_cast %583 : vector<64x1xf32> to vector<8x8x1xf32>
    %cst_193 = arith.constant dense<0xFF800000> : vector<8x1xf32>
    %585 = vector.multi_reduction <maximumf>, %584, %cst_193 [0] : vector<8x8x1xf32> to vector<8x1xf32>
    %586 = vector.shape_cast %585 : vector<8x1xf32> to vector<1x8x1xf32>
    %587 = vector.broadcast %586 : vector<1x8x1xf32> to vector<8x8x1xf32>
    %588 = arith.subf %584, %587 : vector<8x8x1xf32>
    %589 = math.exp %588 : vector<8x8x1xf32>
    %cst_194 = arith.constant dense<0.000000e+00> : vector<8x1xf32>
    %590 = vector.multi_reduction <add>, %589, %cst_194 [0] : vector<8x8x1xf32> to vector<8x1xf32>
    %591 = vector.shape_cast %590 : vector<8x1xf32> to vector<1x8x1xf32>
    %592 = vector.broadcast %591 : vector<1x8x1xf32> to vector<8x8x1xf32>
    %593 = arith.divf %589, %592 : vector<8x8x1xf32>
    %594 = vector.shape_cast %578 : vector<64x64xf32> to vector<8x8x64xf32>
    %595 = vector.broadcast %593 : vector<8x8x1xf32> to vector<8x8x64xf32>
    %596 = arith.mulf %594, %595 : vector<8x8x64xf32>
    %cst_195 = arith.constant dense<0.000000e+00> : vector<8x64xf32>
    %597 = vector.multi_reduction <add>, %596, %cst_195 [0] : vector<8x8x64xf32> to vector<8x64xf32>
    %c0_196 = arith.constant 0 : index
    %c0_197 = arith.constant 0 : index
    %598 = vector.load %arg7[%c0_196, %c0_197] : memref<64x128xf32, #tpu.memory_space<vmem>>, vector<64x128xf32>
    %cst_198 = arith.constant dense<0.000000e+00> : vector<8x128xf32>
    %599 = tpu.matmul %597, %598, %cst_198 {dimension_numbers = #tpu.dot_dimension_numbers<[1], [0], [0], [1], [0, 0, 1, 1], [], []>} : vector<8x64xf32>, vector<64x128xf32>, vector<8x128xf32> -> vector<8x128xf32>
    %c0_199 = arith.constant 0 : index
    %c0_200 = arith.constant 0 : index
    %600 = vector.load %arg8[%c0_199, %c0_200] : memref<1x128xf32, #tpu.memory_space<vmem>>, vector<1x128xf32>
    %601 = vector.broadcast %600 : vector<1x128xf32> to vector<8x128xf32>
    %602 = arith.addf %599, %601 : vector<8x128xf32>
    %c0_201 = arith.constant 0 : index
    %c0_202 = arith.constant 0 : index
    %603 = vector.load %arg9[%c0_201, %c0_202] : memref<8x128xf32, #tpu.memory_space<vmem>>, vector<8x128xf32>
    tpu.vector_store %arg9[%c0_201, %c0_202], %602 {strides = array<i32>} : memref<8x128xf32, #tpu.memory_space<vmem>>, vector<8x128xf32>,
    return
  }
  func.func @transform_0(%arg0: i32) -> (i32, i32, i32) {
    %c0_i32 = arith.constant 0 : i32
    %c0_i32_0 = arith.constant 0 : i32
    %c0_i32_1 = arith.constant 0 : i32
    return %c0_i32, %arg0, %c0_i32_0 : i32, i32, i32
  }
  func.func @transform_1(%arg0: i32) -> (i32, i32) {
    %c0_i32 = arith.constant 0 : i32
    %c0_i32_0 = arith.constant 0 : i32
    %c0_i32_1 = arith.constant 0 : i32
    return %c0_i32, %c0_i32_0 : i32, i32
  }
  func.func @transform_2(%arg0: i32) -> (i32, i32) {
    %c0_i32 = arith.constant 0 : i32
    %c0_i32_0 = arith.constant 0 : i32
    %c0_i32_1 = arith.constant 0 : i32
    return %c0_i32, %c0_i32_0 : i32, i32
  }
  func.func @transform_3(%arg0: i32) -> (i32, i32) {
    %c0_i32 = arith.constant 0 : i32
    %c0_i32_0 = arith.constant 0 : i32
    %c0_i32_1 = arith.constant 0 : i32
    return %c0_i32, %c0_i32_0 : i32, i32
  }
  func.func @transform_4(%arg0: i32) -> (i32, i32) {
    %c0_i32 = arith.constant 0 : i32
    %c0_i32_0 = arith.constant 0 : i32
    %c0_i32_1 = arith.constant 0 : i32
    return %c0_i32, %c0_i32_0 : i32, i32
  }
  func.func @transform_5(%arg0: i32) -> (i32, i32) {
    %c0_i32 = arith.constant 0 : i32
    %c0_i32_0 = arith.constant 0 : i32
    %c0_i32_1 = arith.constant 0 : i32
    return %c0_i32, %c0_i32_0 : i32, i32
  }
  func.func @transform_6(%arg0: i32) -> (i32, i32) {
    %c0_i32 = arith.constant 0 : i32
    %c0_i32_0 = arith.constant 0 : i32
    %c0_i32_1 = arith.constant 0 : i32
    return %c0_i32, %c0_i32_0 : i32, i32
  }
  func.func @transform_7(%arg0: i32) -> (i32, i32) {
    %c0_i32 = arith.constant 0 : i32
    %c0_i32_0 = arith.constant 0 : i32
    %c0_i32_1 = arith.constant 0 : i32
    return %c0_i32, %c0_i32_0 : i32, i32
  }
  func.func @transform_8(%arg0: i32) -> (i32, i32) {
    %c0_i32 = arith.constant 0 : i32
    %c0_i32_0 = arith.constant 0 : i32
    return %arg0, %c0_i32 : i32, i32
  }
}

</mosaic_0001>

<llo_original>
// kernel: tpu_custom_call.1
$region0: #{tpu_custom_call.1}
  #allocation0 [shape = 'u32[]', space=smem, size = 0x4, offset = 0x4, fixed_abs, tag = 'smem constant byte address 0x4 - core index']
  #allocation1 [shape = 'u32[72,128]{1,0:T(1,128)}', space=vmem, size = 0x9000, scoped, tag = 'internal scratch']
  #allocation2 [shape = 'f32[64,256]{1,0:T(8,128)}', space=vmem, size = 0x10000, scoped, tag = 'scratch operand']
  #allocation3 [shape = 'f32[1,1]{1,0:T(1,128)S(1)}', space=vmem, size = 0x200, scoped, tag = 'scoped memory for tpu_custom_call.1']
  %s0 = inlined_call_operand.vmem [shape: f32[8,8,4], index: 0, kind: input, shape index: {}]
  %s1 = inlined_call_operand.vmem [shape: f32[4,256], index: 1, kind: input, shape index: {}]
  %s2 = inlined_call_operand.vmem [shape: f32[1,256], index: 2, kind: input, shape index: {}]
  %s3 = inlined_call_operand.vmem [shape: f32[64,256], index: 3, kind: input, shape index: {}]
  %s4 = inlined_call_operand.vmem [shape: f32[64,1], index: 4, kind: input, shape index: {}]
  %s5 = inlined_call_operand.<no memory space> [shape: f32[1,1], index: 5, kind: input, shape index: {}]
  %s6 = inlined_call_operand.hbm [shape: f32[64,128], index: 6, kind: input, shape index: {}]
  %s7 = inlined_call_operand.vmem [shape: f32[1,128], index: 7, kind: input, shape index: {}]
  %s8 = inlined_call_operand.hbm [shape: f32[8,128], index: 8, kind: output, shape index: {}]
  %s9 = sld [smem:[#allocation0]]
  $region46: #{tpu_custom_call.1} parent=0
    _
  %s11 = ssub.s32 1, %s9
  %s12 = scalar_select 0, %s11, %s9
  %v13 = vstv %s5
  %14 = vst [vmem:[#allocation3] sm:$0x1] %v13
  $region1: #{tpu_custom_call.1} parent=0
    #allocation4 [shape = 'u8[32768]{0}', space=vmem, size = 0x8000, scoped, tag = 'input window, operand 6, single buffered']
    #allocation5 [shape = 's32[1]{0}', space=sflag, size = 0x4, scoped, tag = 'scoped memory for tpu_custom_call.1']
    #allocation6 [shape = 's32[1]{0}', space=sflag, size = 0x4, scoped, tag = 'scoped memory for tpu_custom_call.1']
    #allocation7 [shape = 'u8[4096]{0}', space=vmem, size = 0x1000, scoped, tag = 'output window, operand 0, single buffered']
    %15 = vsyncpa [#allocation5], 0
    %16 = vsyncpa [#allocation6], 0
    // Predicated region
    $region2: #{tpu_custom_call.1} parent=1 // pred_check
      _
    $region3: #{tpu_custom_call.1} parent=1 // pred_check_branch
      %18 = sbr.rel (0) target = $region5
    $region4: #{tpu_custom_call.1} parent=1 // pred_region
      _
    $region5: #{tpu_custom_call.1} parent=1 // pred_fallthru
      _
    // Predicated region
    $region6: #{tpu_custom_call.1} parent=1 // pred_check
      _
    $region7: #{tpu_custom_call.1} parent=1 // pred_check_branch
      %20 = sbr.rel (0) target = $region9
    $region8: #{tpu_custom_call.1} parent=1 // pred_region
      _
    $region9: #{tpu_custom_call.1} parent=1 // pred_fallthru
      _
    // Predicated region
    $region10: #{tpu_custom_call.1} parent=1 // pred_check
      _
    $region11: #{tpu_custom_call.1} parent=1 // pred_check_branch
      %22 = sbr.rel (0) target = $region13
    $region12: #{tpu_custom_call.1} parent=1 // pred_region
      _
    $region13: #{tpu_custom_call.1} parent=1 // pred_fallthru
      _
    // Predicated region
    $region14: #{tpu_custom_call.1} parent=1 // pred_check
      _
    $region15: #{tpu_custom_call.1} parent=1 // pred_check_branch
      %24 = sbr.rel (0) target = $region17
    $region16: #{tpu_custom_call.1} parent=1 // pred_region
      _
    $region17: #{tpu_custom_call.1} parent=1 // pred_fallthru
      _
    // Predicated region
    $region18: #{tpu_custom_call.1} parent=1 // pred_check
      _
    $region19: #{tpu_custom_call.1} parent=1 // pred_check_branch
      %26 = sbr.rel (0) target = $region21
    $region20: #{tpu_custom_call.1} parent=1 // pred_region
      _
    $region21: #{tpu_custom_call.1} parent=1 // pred_fallthru
      _
    // Predicated region
    $region22: #{tpu_custom_call.1} parent=1 // pred_check
      _
    $region23: #{tpu_custom_call.1} parent=1 // pred_check_branch
      %28 = sbr.rel (0) target = $region25
    $region24: #{tpu_custom_call.1} parent=1 // pred_region
      _
    $region25: #{tpu_custom_call.1} parent=1 // pred_fallthru
      _
    // Predicated region
    $region26: #{tpu_custom_call.1} parent=1 // pred_check
      _
    $region27: #{tpu_custom_call.1} parent=1 // pred_check_branch
      %30 = sbr.rel (0) target = $region29
    $region28: #{tpu_custom_call.1} parent=1 // pred_region
      %32 = vsyncadd [#allocation5], 0
      %s33 = sshll.u32 %s6, 4
      %s34 = int_to_ptr.hbm [resolvable:$true] %s33
      %s35 = sshll.u32 [#allocation4], 4
      %s36 = int_to_ptr.vmem [resolvable:$true] %s35
      %41 = dma.hbm_to_vmem [thread:$0]  %s34, 1024, %s36, [#allocation5], 128, 128, 8
    $region29: #{tpu_custom_call.1} parent=1 // pred_fallthru
      _
    // Predicated region
    $region30: #{tpu_custom_call.1} parent=1 // pred_check
      _
    $region31: #{tpu_custom_call.1} parent=1 // pred_check_branch
      %43 = sbr.rel (0) target = $region33
    $region32: #{tpu_custom_call.1} parent=1 // pred_region
      _
    $region33: #{tpu_custom_call.1} parent=1 // pred_fallthru
      _
    // Predicated region
    $region34: #{tpu_custom_call.1} parent=1 // pred_check
      _
    $region35: #{tpu_custom_call.1} parent=1 // pred_check_branch
      %45 = sbr.rel (0) target = $region37
    $region36: #{tpu_custom_call.1} parent=1 // pred_region
      %47 = dma.done [#allocation5], 1024
    $region37: #{tpu_custom_call.1} parent=1 // pred_fallthru
      _
    %v48 = vld [vmem:[%s0] sm:$0xff]
    %v49 = vld [vmem:[%s0 + $0x8] sm:$0xff]
    %v50 = vld [vmem:[%s0 + $0x10] sm:$0xff]
    %v51 = vld [vmem:[%s0 + $0x18] sm:$0xff]
    %v52 = vld [vmem:[%s0 + $0x20] sm:$0xff]
    %v53 = vld [vmem:[%s0 + $0x28] sm:$0xff]
    %v54 = vld [vmem:[%s0 + $0x30] sm:$0xff]
    %v55 = vld [vmem:[%s0 + $0x38] sm:$0xff]
    %v56 = vld [vmem:[%s1] sm:$0xff]
    %v57 = vld [vmem:[%s2] sm:$0x3]
    %v59 = vperm.slane %v57, 0
    %v60 = vperm.slane %v57, 1
    %64 = vst [vmem:[#allocation1] ss:$2 sm:$0xff] %v56
    %v65 = vld.sshfl [vmem:[#allocation1] sm:$0xff pattern:$0x75316420]
    %v66 = vld.sshfl [vmem:[#allocation1 + $0x8] sm:$0xff pattern:$0x75316420]
    %vm67 = vcmask 31744
    %v69 = vsel %vm67, %v48, 0
    %v72 = vsel %vm67, %v49, 0
    %v75 = vsel %vm67, %v50, 0
    %v78 = vsel %vm67, %v51, 0
    %v81 = vsel %vm67, %v52, 0
    %v84 = vsel %vm67, %v53, 0
    %v87 = vsel %vm67, %v54, 0
    %v90 = vsel %vm67, %v55, 0
    %vm92 = vcmask 1043456
    %v93 = vsel %vm92, %v65, 0
    %v95 = vsel %vm92, %v66, 0
    %97 = vmatpush.msra.mxu0 0.0
    %98 = vmatpush.msra.mxu0 0.0
    %99 = vmatpush.msra.mxu0 0.0
    %100 = vmatpush.msra.mxu0 0.0
    %101 = vmatpush.msra.mxu0 0.0
    %102 = vmatpush.msra.mxu0 0.0
    %103 = vmatpush.msra.mxu0 0.0
    %104 = vmatpush.msra.mxu0 0.0
    %105 = vmatpush.msra.mxu0 0.0
    %106 = vmatpush.msra.mxu0 0.0
    %107 = vmatpush.msra.mxu0 0.0
    %108 = vmatpush.msra.mxu0 0.0
    %109 = vmatpush.msra.mxu0 0.0
    %110 = vmatpush.msra.mxu0 0.0
    %111 = vmatpush.msra.mxu0 0.0
    %112 = vmatpush.msra.mxu0 %v93
    %113 = vmatmul.f32.gmra.mxu0 %v69
    %v114 = vpop.f32.mrf.mxu0
    %v115 = vadd.f32 %v59, %v114
    %116 = vmatmul.f32.gmra.mxu0 %v72
    %v117 = vpop.f32.mrf.mxu0
    %v118 = vadd.f32 %v59, %v117
    %119 = vmatmul.f32.gmra.mxu0 %v75
    %v120 = vpop.f32.mrf.mxu0
    %v121 = vadd.f32 %v59, %v120
    %122 = vmatmul.f32.gmra.mxu0 %v78
    %v123 = vpop.f32.mrf.mxu0
    %v124 = vadd.f32 %v59, %v123
    %125 = vmatmul.f32.gmra.mxu0 %v81
    %v126 = vpop.f32.mrf.mxu0
    %v127 = vadd.f32 %v59, %v126
    %128 = vmatmul.f32.gmra.mxu0 %v84
    %v129 = vpop.f32.mrf.mxu0
    %v130 = vadd.f32 %v59, %v129
    %131 = vmatmul.f32.gmra.mxu0 %v87
    %v132 = vpop.f32.mrf.mxu0
    %v133 = vadd.f32 %v59, %v132
    %134 = vmatmul.f32.gmra.mxu0 %v90
    %v135 = vpop.f32.mrf.mxu0
    %v136 = vadd.f32 %v59, %v135
    %137 = vdwg.mxu0
    %138 = vmatpush.msra.mxu0 0.0
    %139 = vmatpush.msra.mxu0 0.0
    %140 = vmatpush.msra.mxu0 0.0
    %141 = vmatpush.msra.mxu0 0.0
    %142 = vmatpush.msra.mxu0 0.0
    %143 = vmatpush.msra.mxu0 0.0
    %144 = vmatpush.msra.mxu0 0.0
    %145 = vmatpush.msra.mxu0 0.0
    %146 = vmatpush.msra.mxu0 0.0
    %147 = vmatpush.msra.mxu0 0.0
    %148 = vmatpush.msra.mxu0 0.0
    %149 = vmatpush.msra.mxu0 0.0
    %150 = vmatpush.msra.mxu0 0.0
    %151 = vmatpush.msra.mxu0 0.0
    %152 = vmatpush.msra.mxu0 0.0
    %153 = vmatpush.msra.mxu0 %v95
    %154 = vmatmul.f32.gmra.mxu0 %v69
    %v155 = vpop.f32.mrf.mxu0
    %v156 = vadd.f32 %v60, %v155
    %157 = vmatmul.f32.gmra.mxu0 %v72
    %v158 = vpop.f32.mrf.mxu0
    %v159 = vadd.f32 %v60, %v158
    %160 = vmatmul.f32.gmra.mxu0 %v75
    %v161 = vpop.f32.mrf.mxu0
    %v162 = vadd.f32 %v60, %v161
    %163 = vmatmul.f32.gmra.mxu0 %v78
    %v164 = vpop.f32.mrf.mxu0
    %v165 = vadd.f32 %v60, %v164
    %166 = vmatmul.f32.gmra.mxu0 %v81
    %v167 = vpop.f32.mrf.mxu0
    %v168 = vadd.f32 %v60, %v167
    %169 = vmatmul.f32.gmra.mxu0 %v84
    %v170 = vpop.f32.mrf.mxu0
    %v171 = vadd.f32 %v60, %v170
    %172 = vmatmul.f32.gmra.mxu0 %v87
    %v173 = vpop.f32.mrf.mxu0
    %v174 = vadd.f32 %v60, %v173
    %175 = vmatmul.f32.gmra.mxu0 %v90
    %v176 = vpop.f32.mrf.mxu0
    %v177 = vadd.f32 %v60, %v176
    %178 = vdwg.mxu0
    %179 = vst [vmem:[#allocation2] sm:$0xff] %v115
    %180 = vst [vmem:[#allocation2 + $0x8] sm:$0xff] %v156
    %181 = vst [vmem:[#allocation2 + $0x10] sm:$0xff] %v118
    %182 = vst [vmem:[#allocation2 + $0x18] sm:$0xff] %v159
    %183 = vst [vmem:[#allocation2 + $0x20] sm:$0xff] %v121
    %184 = vst [vmem:[#allocation2 + $0x28] sm:$0xff] %v162
    %185 = vst [vmem:[#allocation2 + $0x30] sm:$0xff] %v124
    %186 = vst [vmem:[#allocation2 + $0x38] sm:$0xff] %v165
    %187 = vst [vmem:[#allocation2 + $0x40] sm:$0xff] %v127
    %188 = vst [vmem:[#allocation2 + $0x48] sm:$0xff] %v168
    %189 = vst [vmem:[#allocation2 + $0x50] sm:$0xff] %v130
    %190 = vst [vmem:[#allocation2 + $0x58] sm:$0xff] %v171
    %191 = vst [vmem:[#allocation2 + $0x60] sm:$0xff] %v133
    %192 = vst [vmem:[#allocation2 + $0x68] sm:$0xff] %v174
    %193 = vst [vmem:[#allocation2 + $0x70] sm:$0xff] %v136
    %194 = vst [vmem:[#allocation2 + $0x78] sm:$0xff] %v177
    %v195 = vld [vmem:[%s3] sm:$0xff]
    %v196 = vld [vmem:[%s3 + $0x8] sm:$0xff]
    %v197 = vld [vmem:[%s3 + $0x10] sm:$0xff]
    %v198 = vld [vmem:[%s3 + $0x18] sm:$0xff]
    %v199 = vld [vmem:[%s3 + $0x20] sm:$0xff]
    %v200 = vld [vmem:[%s3 + $0x28] sm:$0xff]
    %v201 = vld [vmem:[%s3 + $0x30] sm:$0xff]
    %v202 = vld [vmem:[%s3 + $0x38] sm:$0xff]
    %v203 = vld [vmem:[%s3 + $0x40] sm:$0xff]
    %v204 = vld [vmem:[%s3 + $0x48] sm:$0xff]
    %v205 = vld [vmem:[%s3 + $0x50] sm:$0xff]
    %v206 = vld [vmem:[%s3 + $0x58] sm:$0xff]
    %v207 = vld [vmem:[%s3 + $0x60] sm:$0xff]
    %v208 = vld [vmem:[%s3 + $0x68] sm:$0xff]
    %v209 = vld [vmem:[%s3 + $0x70] sm:$0xff]
    %v210 = vld [vmem:[%s3 + $0x78] sm:$0xff]
    %vm211 = vcmask 523264
    %v213 = vsel %vm211, 0.0, 0
    %215 = vmatpush.msra.mxu0 0.0
    %216 = vmatpush.msra.mxu0 0.0
    %217 = vmatpush.msra.mxu0 0.0
    %218 = vmatpush.msra.mxu0 0.0
    %219 = vmatpush.msra.mxu0 0.0
    %220 = vmatpush.msra.mxu0 0.0
    %221 = vmatpush.msra.mxu0 0.0
    %222 = vmatpush.msra.mxu0 0.0
    %223 = vmatpush.msra.mxu0 %v209
    %224 = vmatpush.msra.mxu0 %v207
    %225 = vmatpush.msra.mxu0 %v205
    %226 = vmatpush.msra.mxu0 %v203
    %227 = vmatpush.msra.mxu0 %v201
    %228 = vmatpush.msra.mxu0 %v199
    %229 = vmatpush.msra.mxu0 %v197
    %230 = vmatpush.msra.mxu0 %v195
    %231 = vmatmul.f32.gmra.mxu0 %v213
    %v232 = vpop.f32.mrf.mxu0
    %v233 = vadd.f32 0.0, %v232
    %234 = vdwg.mxu0
    %235 = vmatpush.msra.mxu0 0.0
    %236 = vmatpush.msra.mxu0 0.0
    %237 = vmatpush.msra.mxu0 0.0
    %238 = vmatpush.msra.mxu0 0.0
    %239 = vmatpush.msra.mxu0 0.0
    %240 = vmatpush.msra.mxu0 0.0
    %241 = vmatpush.msra.mxu0 0.0
    %242 = vmatpush.msra.mxu0 0.0
    %243 = vmatpush.msra.mxu0 %v210
    %244 = vmatpush.msra.mxu0 %v208
    %245 = vmatpush.msra.mxu0 %v206
    %246 = vmatpush.msra.mxu0 %v204
    %247 = vmatpush.msra.mxu0 %v202
    %248 = vmatpush.msra.mxu0 %v200
    %249 = vmatpush.msra.mxu0 %v198
    %250 = vmatpush.msra.mxu0 %v196
    %251 = vmatmul.f32.gmra.mxu0 %v213
    %v252 = vpop.f32.mrf.mxu0
    %v253 = vadd.f32 0.0, %v252
    %254 = vdwg.mxu0
    %v255 = vld [vmem:[#allocation2] sm:$0xff]
    %v256 = vadd.f32 %v255, %v233
    %v257 = vld [vmem:[#allocation2 + $0x78] sm:$0xff]
    %v258 = vadd.f32 %v257, %v253
    %v259 = vmul.f32 %v256, 0.5
    %v260 = vtanh.pop %v259
    %v261 = vmul.f32 %v260, 0.5
    %v262 = vadd.f32 %v261, 0.5
    %v263 = vtanh.pop %v256
    %v264 = vmul.f32 %v262, 0.0
    %266 = vrot.lane.b32.xlu0 %v263, 64
    %v267 = vpop.permute.xlu0 %266
    %v269 = vmul.f32 %v262, %v267
    %271 = vrot.lane.b32.xlu0 %v269, 32
    %v272 = vpop.permute.xlu0 %271
    %v274 = vadd.f32 %v264, %v272
    %v275 = vtanh.pop %v274
    %277 = vrot.lane.b32.xlu0 %v275, 64
    %v278 = vpop.permute.xlu0 %277
    %v280 = vmul.f32 %v262, %v278
    %v281 = vmul.f32 %v258, 0.5
    %v282 = vtanh.pop %v281
    %v283 = vmul.f32 %v282, 0.5
    %v284 = vadd.f32 %v283, 0.5
    %v285 = vtanh.pop %v258
    %v286 = vmul.f32 %v284, 0.0
    %288 = vrot.lane.b32.xlu0 %v285, 64
    %v289 = vpop.permute.xlu0 %288
    %v291 = vmul.f32 %v284, %v289
    %293 = vrot.lane.b32.xlu0 %v291, 32
    %v294 = vpop.permute.xlu0 %293
    %v296 = vadd.f32 %v286, %v294
    %v297 = vtanh.pop %v296
    %299 = vrot.lane.b32.xlu0 %v297, 64
    %v300 = vpop.permute.xlu0 %299
    %v302 = vmul.f32 %v284, %v300
    %304 = vrot.lane.b32.xlu0 %v280, 32
    %v305 = vpop.permute.xlu0 %304
    %308 = vrot.lane.b32.xlu0 %v302, 64
    %v309 = vpop.permute.xlu0 %308
    %vm311 = vcmask 261120
    %v312 = vsel %vm311, %v305, %v309
    %v314 = vsel %vm211, %v312, 0
    %316 = vmatpush.msra.mxu0 0.0
    %317 = vmatpush.msra.mxu0 0.0
    %318 = vmatpush.msra.mxu0 0.0
    %319 = vmatpush.msra.mxu0 0.0
    %320 = vmatpush.msra.mxu0 0.0
    %321 = vmatpush.msra.mxu0 0.0
    %322 = vmatpush.msra.mxu0 0.0
    %323 = vmatpush.msra.mxu0 0.0
    %324 = vmatpush.msra.mxu0 %v209
    %325 = vmatpush.msra.mxu0 %v207
    %326 = vmatpush.msra.mxu0 %v205
    %327 = vmatpush.msra.mxu0 %v203
    %328 = vmatpush.msra.mxu0 %v201
    %329 = vmatpush.msra.mxu0 %v199
    %330 = vmatpush.msra.mxu0 %v197
    %331 = vmatpush.msra.mxu0 %v195
    %332 = vmatmul.f32.gmra.mxu0 %v314
    %v333 = vpop.f32.mrf.mxu0
    %v334 = vadd.f32 0.0, %v333
    %335 = vdwg.mxu0
    %336 = vmatpush.msra.mxu0 0.0
    %337 = vmatpush.msra.mxu0 0.0
    %338 = vmatpush.msra.mxu0 0.0
    %339 = vmatpush.msra.mxu0 0.0
    %340 = vmatpush.msra.mxu0 0.0
    %341 = vmatpush.msra.mxu0 0.0
    %342 = vmatpush.msra.mxu0 0.0
    %343 = vmatpush.msra.mxu0 0.0
    %344 = vmatpush.msra.mxu0 %v210
    %345 = vmatpush.msra.mxu0 %v208
    %346 = vmatpush.msra.mxu0 %v206
    %347 = vmatpush.msra.mxu0 %v204
    %348 = vmatpush.msra.mxu0 %v202
    %349 = vmatpush.msra.mxu0 %v200
    %350 = vmatpush.msra.mxu0 %v198
    %351 = vmatpush.msra.mxu0 %v196
    %352 = vmatmul.f32.gmra.mxu0 %v314
    %v353 = vpop.f32.mrf.mxu0
    %v354 = vadd.f32 0.0, %v353
    %355 = vdwg.mxu0
    %v356 = vld [vmem:[#allocation2 + $0x10] sm:$0xff]
    %v357 = vadd.f32 %v356, %v334
    %v358 = vld [vmem:[#allocation2 + $0x68] sm:$0xff]
    %v359 = vadd.f32 %v358, %v354
    %v360 = vmul.f32 %v357, 0.5
    %v361 = vtanh.pop %v360
    %v362 = vmul.f32 %v361, 0.5
    %v363 = vadd.f32 %v362, 0.5
    %v364 = vtanh.pop %v357
    %v365 = vmul.f32 %v363, %v274
    %367 = vrot.lane.b32.xlu0 %v364, 64
    %v368 = vpop.permute.xlu0 %367
    %v370 = vmul.f32 %v363, %v368
    %372 = vrot.lane.b32.xlu0 %v370, 32
    %v373 = vpop.permute.xlu0 %372
    %v375 = vadd.f32 %v365, %v373
    %v376 = vtanh.pop %v375
    %378 = vrot.lane.b32.xlu0 %v376, 64
    %v379 = vpop.permute.xlu0 %378
    %v381 = vmul.f32 %v363, %v379
    %v382 = vmul.f32 %v359, 0.5
    %v383 = vtanh.pop %v382
    %v384 = vmul.f32 %v383, 0.5
    %v385 = vadd.f32 %v384, 0.5
    %v386 = vtanh.pop %v359
    %v387 = vmul.f32 %v385, %v296
    %389 = vrot.lane.b32.xlu0 %v386, 64
    %v390 = vpop.permute.xlu0 %389
    %v392 = vmul.f32 %v385, %v390
    %394 = vrot.lane.b32.xlu0 %v392, 32
    %v395 = vpop.permute.xlu0 %394
    %v397 = vadd.f32 %v387, %v395
    %v398 = vtanh.pop %v397
    %400 = vrot.lane.b32.xlu0 %v398, 64
    %v401 = vpop.permute.xlu0 %400
    %v403 = vmul.f32 %v385, %v401
    %405 = vrot.lane.b32.xlu0 %v381, 32
    %v406 = vpop.permute.xlu0 %405
    %409 = vrot.lane.b32.xlu0 %v403, 64
    %v410 = vpop.permute.xlu0 %409
    %v412 = vsel %vm311, %v406, %v410
    %v414 = vsel %vm211, %v412, 0
    %416 = vmatpush.msra.mxu0 0.0
    %417 = vmatpush.msra.mxu0 0.0
    %418 = vmatpush.msra.mxu0 0.0
    %419 = vmatpush.msra.mxu0 0.0
    %420 = vmatpush.msra.mxu0 0.0
    %421 = vmatpush.msra.mxu0 0.0
    %422 = vmatpush.msra.mxu0 0.0
    %423 = vmatpush.msra.mxu0 0.0
    %424 = vmatpush.msra.mxu0 %v209
    %425 = vmatpush.msra.mxu0 %v207
    %426 = vmatpush.msra.mxu0 %v205
    %427 = vmatpush.msra.mxu0 %v203
    %428 = vmatpush.msra.mxu0 %v201
    %429 = vmatpush.msra.mxu0 %v199
    %430 = vmatpush.msra.mxu0 %v197
    %431 = vmatpush.msra.mxu0 %v195
    %432 = vmatmul.f32.gmra.mxu0 %v414
    %v433 = vpop.f32.mrf.mxu0
    %v434 = vadd.f32 0.0, %v433
    %435 = vdwg.mxu0
    %436 = vmatpush.msra.mxu0 0.0
    %437 = vmatpush.msra.mxu0 0.0
    %438 = vmatpush.msra.mxu0 0.0
    %439 = vmatpush.msra.mxu0 0.0
    %440 = vmatpush.msra.mxu0 0.0
    %441 = vmatpush.msra.mxu0 0.0
    %442 = vmatpush.msra.mxu0 0.0
    %443 = vmatpush.msra.mxu0 0.0
    %444 = vmatpush.msra.mxu0 %v210
    %445 = vmatpush.msra.mxu0 %v208
    %446 = vmatpush.msra.mxu0 %v206
    %447 = vmatpush.msra.mxu0 %v204
    %448 = vmatpush.msra.mxu0 %v202
    %449 = vmatpush.msra.mxu0 %v200
    %450 = vmatpush.msra.mxu0 %v198
    %451 = vmatpush.msra.mxu0 %v196
    %452 = vmatmul.f32.gmra.mxu0 %v414
    %v453 = vpop.f32.mrf.mxu0
    %v454 = vadd.f32 0.0, %v453
    %455 = vdwg.mxu0
    %v456 = vld [vmem:[#allocation2 + $0x20] sm:$0xff]
    %v457 = vadd.f32 %v456, %v434
    %v458 = vld [vmem:[#allocation2 + $0x58] sm:$0xff]
    %v459 = vadd.f32 %v458, %v454
    %v460 = vmul.f32 %v457, 0.5
    %v461 = vtanh.pop %v460
    %v462 = vmul.f32 %v461, 0.5
    %v463 = vadd.f32 %v462, 0.5
    %v464 = vtanh.pop %v457
    %v465 = vmul.f32 %v463, %v375
    %467 = vrot.lane.b32.xlu0 %v464, 64
    %v468 = vpop.permute.xlu0 %467
    %v470 = vmul.f32 %v463, %v468
    %472 = vrot.lane.b32.xlu0 %v470, 32
    %v473 = vpop.permute.xlu0 %472
    %v475 = vadd.f32 %v465, %v473
    %v476 = vtanh.pop %v475
    %478 = vrot.lane.b32.xlu0 %v476, 64
    %v479 = vpop.permute.xlu0 %478
    %v481 = vmul.f32 %v463, %v479
    %v482 = vmul.f32 %v459, 0.5
    %v483 = vtanh.pop %v482
    %v484 = vmul.f32 %v483, 0.5
    %v485 = vadd.f32 %v484, 0.5
    %v486 = vtanh.pop %v459
    %v487 = vmul.f32 %v485, %v397
    %489 = vrot.lane.b32.xlu0 %v486, 64
    %v490 = vpop.permute.xlu0 %489
    %v492 = vmul.f32 %v485, %v490
    %494 = vrot.lane.b32.xlu0 %v492, 32
    %v495 = vpop.permute.xlu0 %494
    %v497 = vadd.f32 %v487, %v495
    %v498 = vtanh.pop %v497
    %500 = vrot.lane.b32.xlu0 %v498, 64
    %v501 = vpop.permute.xlu0 %500
    %v503 = vmul.f32 %v485, %v501
    %505 = vrot.lane.b32.xlu0 %v481, 32
    %v506 = vpop.permute.xlu0 %505
    %509 = vrot.lane.b32.xlu0 %v503, 64
    %v510 = vpop.permute.xlu0 %509
    %v512 = vsel %vm311, %v506, %v510
    %v514 = vsel %vm211, %v512, 0
    %516 = vmatpush.msra.mxu0 0.0
    %517 = vmatpush.msra.mxu0 0.0
    %518 = vmatpush.msra.mxu0 0.0
    %519 = vmatpush.msra.mxu0 0.0
    %520 = vmatpush.msra.mxu0 0.0
    %521 = vmatpush.msra.mxu0 0.0
    %522 = vmatpush.msra.mxu0 0.0
    %523 = vmatpush.msra.mxu0 0.0
    %524 = vmatpush.msra.mxu0 %v209
    %525 = vmatpush.msra.mxu0 %v207
    %526 = vmatpush.msra.mxu0 %v205
    %527 = vmatpush.msra.mxu0 %v203
    %528 = vmatpush.msra.mxu0 %v201
    %529 = vmatpush.msra.mxu0 %v199
    %530 = vmatpush.msra.mxu0 %v197
    %531 = vmatpush.msra.mxu0 %v195
    %532 = vmatmul.f32.gmra.mxu0 %v514
    %v533 = vpop.f32.mrf.mxu0
    %v534 = vadd.f32 0.0, %v533
    %535 = vdwg.mxu0
    %536 = vmatpush.msra.mxu0 0.0
    %537 = vmatpush.msra.mxu0 0.0
    %538 = vmatpush.msra.mxu0 0.0
    %539 = vmatpush.msra.mxu0 0.0
    %540 = vmatpush.msra.mxu0 0.0
    %541 = vmatpush.msra.mxu0 0.0
    %542 = vmatpush.msra.mxu0 0.0
    %543 = vmatpush.msra.mxu0 0.0
    %544 = vmatpush.msra.mxu0 %v210
    %545 = vmatpush.msra.mxu0 %v208
    %546 = vmatpush.msra.mxu0 %v206
    %547 = vmatpush.msra.mxu0 %v204
    %548 = vmatpush.msra.mxu0 %v202
    %549 = vmatpush.msra.mxu0 %v200
    %550 = vmatpush.msra.mxu0 %v198
    %551 = vmatpush.msra.mxu0 %v196
    %552 = vmatmul.f32.gmra.mxu0 %v514
    %v553 = vpop.f32.mrf.mxu0
    %v554 = vadd.f32 0.0, %v553
    %555 = vdwg.mxu0
    %v556 = vld [vmem:[#allocation2 + $0x30] sm:$0xff]
    %v557 = vadd.f32 %v556, %v534
    %v558 = vld [vmem:[#allocation2 + $0x48] sm:$0xff]
    %v559 = vadd.f32 %v558, %v554
    %v560 = vmul.f32 %v557, 0.5
    %v561 = vtanh.pop %v560
    %v562 = vmul.f32 %v561, 0.5
    %v563 = vadd.f32 %v562, 0.5
    %v564 = vtanh.pop %v557
    %v565 = vmul.f32 %v563, %v475
    %567 = vrot.lane.b32.xlu0 %v564, 64
    %v568 = vpop.permute.xlu0 %567
    %v570 = vmul.f32 %v563, %v568
    %572 = vrot.lane.b32.xlu0 %v570, 32
    %v573 = vpop.permute.xlu0 %572
    %v575 = vadd.f32 %v565, %v573
    %v576 = vtanh.pop %v575
    %578 = vrot.lane.b32.xlu0 %v576, 64
    %v579 = vpop.permute.xlu0 %578
    %v581 = vmul.f32 %v563, %v579
    %v582 = vmul.f32 %v559, 0.5
    %v583 = vtanh.pop %v582
    %v584 = vmul.f32 %v583, 0.5
    %v585 = vadd.f32 %v584, 0.5
    %v586 = vtanh.pop %v559
    %v587 = vmul.f32 %v585, %v497
    %589 = vrot.lane.b32.xlu0 %v586, 64
    %v590 = vpop.permute.xlu0 %589
    %v592 = vmul.f32 %v585, %v590
    %594 = vrot.lane.b32.xlu0 %v592, 32
    %v595 = vpop.permute.xlu0 %594
    %v597 = vadd.f32 %v587, %v595
    %v598 = vtanh.pop %v597
    %600 = vrot.lane.b32.xlu0 %v598, 64
    %v601 = vpop.permute.xlu0 %600
    %v603 = vmul.f32 %v585, %v601
    %605 = vrot.lane.b32.xlu0 %v581, 32
    %v606 = vpop.permute.xlu0 %605
    %609 = vrot.lane.b32.xlu0 %v603, 64
    %v610 = vpop.permute.xlu0 %609
    %v612 = vsel %vm311, %v606, %v610
    %v614 = vsel %vm211, %v612, 0
    %616 = vmatpush.msra.mxu0 0.0
    %617 = vmatpush.msra.mxu0 0.0
    %618 = vmatpush.msra.mxu0 0.0
    %619 = vmatpush.msra.mxu0 0.0
    %620 = vmatpush.msra.mxu0 0.0
    %621 = vmatpush.msra.mxu0 0.0
    %622 = vmatpush.msra.mxu0 0.0
    %623 = vmatpush.msra.mxu0 0.0
    %624 = vmatpush.msra.mxu0 %v209
    %625 = vmatpush.msra.mxu0 %v207
    %626 = vmatpush.msra.mxu0 %v205
    %627 = vmatpush.msra.mxu0 %v203
    %628 = vmatpush.msra.mxu0 %v201
    %629 = vmatpush.msra.mxu0 %v199
    %630 = vmatpush.msra.mxu0 %v197
    %631 = vmatpush.msra.mxu0 %v195
    %632 = vmatmul.f32.gmra.mxu0 %v614
    %v633 = vpop.f32.mrf.mxu0
    %v634 = vadd.f32 0.0, %v633
    %635 = vdwg.mxu0
    %636 = vmatpush.msra.mxu0 0.0
    %637 = vmatpush.msra.mxu0 0.0
    %638 = vmatpush.msra.mxu0 0.0
    %639 = vmatpush.msra.mxu0 0.0
    %640 = vmatpush.msra.mxu0 0.0
    %641 = vmatpush.msra.mxu0 0.0
    %642 = vmatpush.msra.mxu0 0.0
    %643 = vmatpush.msra.mxu0 0.0
    %644 = vmatpush.msra.mxu0 %v210
    %645 = vmatpush.msra.mxu0 %v208
    %646 = vmatpush.msra.mxu0 %v206
    %647 = vmatpush.msra.mxu0 %v204
    %648 = vmatpush.msra.mxu0 %v202
    %649 = vmatpush.msra.mxu0 %v200
    %650 = vmatpush.msra.mxu0 %v198
    %651 = vmatpush.msra.mxu0 %v196
    %652 = vmatmul.f32.gmra.mxu0 %v614
    %v653 = vpop.f32.mrf.mxu0
    %v654 = vadd.f32 0.0, %v653
    %655 = vdwg.mxu0
    %v656 = vld [vmem:[#allocation2 + $0x40] sm:$0xff]
    %v657 = vadd.f32 %v656, %v634
    %v658 = vld [vmem:[#allocation2 + $0x38] sm:$0xff]
    %v659 = vadd.f32 %v658, %v654
    %v660 = vmul.f32 %v657, 0.5
    %v661 = vtanh.pop %v660
    %v662 = vmul.f32 %v661, 0.5
    %v663 = vadd.f32 %v662, 0.5
    %v664 = vtanh.pop %v657
    %v665 = vmul.f32 %v663, %v575
    %667 = vrot.lane.b32.xlu0 %v664, 64
    %v668 = vpop.permute.xlu0 %667
    %v670 = vmul.f32 %v663, %v668
    %672 = vrot.lane.b32.xlu0 %v670, 32
    %v673 = vpop.permute.xlu0 %672
    %v675 = vadd.f32 %v665, %v673
    %v676 = vtanh.pop %v675
    %678 = vrot.lane.b32.xlu0 %v676, 64
    %v679 = vpop.permute.xlu0 %678
    %v681 = vmul.f32 %v663, %v679
    %v682 = vmul.f32 %v659, 0.5
    %v683 = vtanh.pop %v682
    %v684 = vmul.f32 %v683, 0.5
    %v685 = vadd.f32 %v684, 0.5
    %v686 = vtanh.pop %v659
    %v687 = vmul.f32 %v685, %v597
    %689 = vrot.lane.b32.xlu0 %v686, 64
    %v690 = vpop.permute.xlu0 %689
    %v692 = vmul.f32 %v685, %v690
    %694 = vrot.lane.b32.xlu0 %v692, 32
    %v695 = vpop.permute.xlu0 %694
    %v697 = vadd.f32 %v687, %v695
    %v698 = vtanh.pop %v697
    %700 = vrot.lane.b32.xlu0 %v698, 64
    %v701 = vpop.permute.xlu0 %700
    %v703 = vmul.f32 %v685, %v701
    %705 = vrot.lane.b32.xlu0 %v681, 32
    %v706 = vpop.permute.xlu0 %705
    %709 = vrot.lane.b32.xlu0 %v703, 64
    %v710 = vpop.permute.xlu0 %709
    %v712 = vsel %vm311, %v706, %v710
    %v714 = vsel %vm211, %v712, 0
    %716 = vmatpush.msra.mxu0 0.0
    %717 = vmatpush.msra.mxu0 0.0
    %718 = vmatpush.msra.mxu0 0.0
    %719 = vmatpush.msra.mxu0 0.0
    %720 = vmatpush.msra.mxu0 0.0
    %721 = vmatpush.msra.mxu0 0.0
    %722 = vmatpush.msra.mxu0 0.0
    %723 = vmatpush.msra.mxu0 0.0
    %724 = vmatpush.msra.mxu0 %v209
    %725 = vmatpush.msra.mxu0 %v207
    %726 = vmatpush.msra.mxu0 %v205
    %727 = vmatpush.msra.mxu0 %v203
    %728 = vmatpush.msra.mxu0 %v201
    %729 = vmatpush.msra.mxu0 %v199
    %730 = vmatpush.msra.mxu0 %v197
    %731 = vmatpush.msra.mxu0 %v195
    %732 = vmatmul.f32.gmra.mxu0 %v714
    %v733 = vpop.f32.mrf.mxu0
    %v734 = vadd.f32 0.0, %v733
    %735 = vdwg.mxu0
    %736 = vmatpush.msra.mxu0 0.0
    %737 = vmatpush.msra.mxu0 0.0
    %738 = vmatpush.msra.mxu0 0.0
    %739 = vmatpush.msra.mxu0 0.0
    %740 = vmatpush.msra.mxu0 0.0
    %741 = vmatpush.msra.mxu0 0.0
    %742 = vmatpush.msra.mxu0 0.0
    %743 = vmatpush.msra.mxu0 0.0
    %744 = vmatpush.msra.mxu0 %v210
    %745 = vmatpush.msra.mxu0 %v208
    %746 = vmatpush.msra.mxu0 %v206
    %747 = vmatpush.msra.mxu0 %v204
    %748 = vmatpush.msra.mxu0 %v202
    %749 = vmatpush.msra.mxu0 %v200
    %750 = vmatpush.msra.mxu0 %v198
    %751 = vmatpush.msra.mxu0 %v196
    %752 = vmatmul.f32.gmra.mxu0 %v714
    %v753 = vpop.f32.mrf.mxu0
    %v754 = vadd.f32 0.0, %v753
    %755 = vdwg.mxu0
    %v756 = vld [vmem:[#allocation2 + $0x50] sm:$0xff]
    %v757 = vadd.f32 %v756, %v734
    %v758 = vld [vmem:[#allocation2 + $0x28] sm:$0xff]
    %v759 = vadd.f32 %v758, %v754
    %v760 = vmul.f32 %v757, 0.5
    %v761 = vtanh.pop %v760
    %v762 = vmul.f32 %v761, 0.5
    %v763 = vadd.f32 %v762, 0.5
    %v764 = vtanh.pop %v757
    %v765 = vmul.f32 %v763, %v675
    %767 = vrot.lane.b32.xlu0 %v764, 64
    %v768 = vpop.permute.xlu0 %767
    %v770 = vmul.f32 %v763, %v768
    %772 = vrot.lane.b32.xlu0 %v770, 32
    %v773 = vpop.permute.xlu0 %772
    %v775 = vadd.f32 %v765, %v773
    %v776 = vtanh.pop %v775
    %778 = vrot.lane.b32.xlu0 %v776, 64
    %v779 = vpop.permute.xlu0 %778
    %v781 = vmul.f32 %v763, %v779
    %v782 = vmul.f32 %v759, 0.5
    %v783 = vtanh.pop %v782
    %v784 = vmul.f32 %v783, 0.5
    %v785 = vadd.f32 %v784, 0.5
    %v786 = vtanh.pop %v759
    %v787 = vmul.f32 %v785, %v697
    %789 = vrot.lane.b32.xlu0 %v786, 64
    %v790 = vpop.permute.xlu0 %789
    %v792 = vmul.f32 %v785, %v790
    %794 = vrot.lane.b32.xlu0 %v792, 32
    %v795 = vpop.permute.xlu0 %794
    %v797 = vadd.f32 %v787, %v795
    %v798 = vtanh.pop %v797
    %800 = vrot.lane.b32.xlu0 %v798, 64
    %v801 = vpop.permute.xlu0 %800
    %v803 = vmul.f32 %v785, %v801
    %805 = vrot.lane.b32.xlu0 %v781, 32
    %v806 = vpop.permute.xlu0 %805
    %809 = vrot.lane.b32.xlu0 %v803, 64
    %v810 = vpop.permute.xlu0 %809
    %v812 = vsel %vm311, %v806, %v810
    %v814 = vsel %vm211, %v812, 0
    %816 = vmatpush.msra.mxu0 0.0
    %817 = vmatpush.msra.mxu0 0.0
    %818 = vmatpush.msra.mxu0 0.0
    %819 = vmatpush.msra.mxu0 0.0
    %820 = vmatpush.msra.mxu0 0.0
    %821 = vmatpush.msra.mxu0 0.0
    %822 = vmatpush.msra.mxu0 0.0
    %823 = vmatpush.msra.mxu0 0.0
    %824 = vmatpush.msra.mxu0 %v209
    %825 = vmatpush.msra.mxu0 %v207
    %826 = vmatpush.msra.mxu0 %v205
    %827 = vmatpush.msra.mxu0 %v203
    %828 = vmatpush.msra.mxu0 %v201
    %829 = vmatpush.msra.mxu0 %v199
    %830 = vmatpush.msra.mxu0 %v197
    %831 = vmatpush.msra.mxu0 %v195
    %832 = vmatmul.f32.gmra.mxu0 %v814
    %v833 = vpop.f32.mrf.mxu0
    %v834 = vadd.f32 0.0, %v833
    %835 = vdwg.mxu0
    %836 = vmatpush.msra.mxu0 0.0
    %837 = vmatpush.msra.mxu0 0.0
    %838 = vmatpush.msra.mxu0 0.0
    %839 = vmatpush.msra.mxu0 0.0
    %840 = vmatpush.msra.mxu0 0.0
    %841 = vmatpush.msra.mxu0 0.0
    %842 = vmatpush.msra.mxu0 0.0
    %843 = vmatpush.msra.mxu0 0.0
    %844 = vmatpush.msra.mxu0 %v210
    %845 = vmatpush.msra.mxu0 %v208
    %846 = vmatpush.msra.mxu0 %v206
    %847 = vmatpush.msra.mxu0 %v204
    %848 = vmatpush.msra.mxu0 %v202
    %849 = vmatpush.msra.mxu0 %v200
    %850 = vmatpush.msra.mxu0 %v198
    %851 = vmatpush.msra.mxu0 %v196
    %852 = vmatmul.f32.gmra.mxu0 %v814
    %v853 = vpop.f32.mrf.mxu0
    %v854 = vadd.f32 0.0, %v853
    %855 = vdwg.mxu0
    %v856 = vld [vmem:[#allocation2 + $0x60] sm:$0xff]
    %v857 = vadd.f32 %v856, %v834
    %v858 = vld [vmem:[#allocation2 + $0x18] sm:$0xff]
    %v859 = vadd.f32 %v858, %v854
    %v860 = vmul.f32 %v857, 0.5
    %v861 = vtanh.pop %v860
    %v862 = vmul.f32 %v861, 0.5
    %v863 = vadd.f32 %v862, 0.5
    %v864 = vtanh.pop %v857
    %v865 = vmul.f32 %v863, %v775
    %867 = vrot.lane.b32.xlu0 %v864, 64
    %v868 = vpop.permute.xlu0 %867
    %v870 = vmul.f32 %v863, %v868
    %872 = vrot.lane.b32.xlu0 %v870, 32
    %v873 = vpop.permute.xlu0 %872
    %v875 = vadd.f32 %v865, %v873
    %v876 = vtanh.pop %v875
    %878 = vrot.lane.b32.xlu0 %v876, 64
    %v879 = vpop.permute.xlu0 %878
    %v881 = vmul.f32 %v863, %v879
    %v882 = vmul.f32 %v859, 0.5
    %v883 = vtanh.pop %v882
    %v884 = vmul.f32 %v883, 0.5
    %v885 = vadd.f32 %v884, 0.5
    %v886 = vtanh.pop %v859
    %v887 = vmul.f32 %v885, %v797
    %889 = vrot.lane.b32.xlu0 %v886, 64
    %v890 = vpop.permute.xlu0 %889
    %v892 = vmul.f32 %v885, %v890
    %894 = vrot.lane.b32.xlu0 %v892, 32
    %v895 = vpop.permute.xlu0 %894
    %v897 = vadd.f32 %v887, %v895
    %v898 = vtanh.pop %v897
    %900 = vrot.lane.b32.xlu0 %v898, 64
    %v901 = vpop.permute.xlu0 %900
    %v903 = vmul.f32 %v885, %v901
    %905 = vrot.lane.b32.xlu0 %v881, 32
    %v906 = vpop.permute.xlu0 %905
    %909 = vrot.lane.b32.xlu0 %v903, 64
    %v910 = vpop.permute.xlu0 %909
    %v912 = vsel %vm311, %v906, %v910
    %v914 = vsel %vm211, %v912, 0
    %916 = vmatpush.msra.mxu0 0.0
    %917 = vmatpush.msra.mxu0 0.0
    %918 = vmatpush.msra.mxu0 0.0
    %919 = vmatpush.msra.mxu0 0.0
    %920 = vmatpush.msra.mxu0 0.0
    %921 = vmatpush.msra.mxu0 0.0
    %922 = vmatpush.msra.mxu0 0.0
    %923 = vmatpush.msra.mxu0 0.0
    %924 = vmatpush.msra.mxu0 %v209
    %925 = vmatpush.msra.mxu0 %v207
    %926 = vmatpush.msra.mxu0 %v205
    %927 = vmatpush.msra.mxu0 %v203
    %928 = vmatpush.msra.mxu0 %v201
    %929 = vmatpush.msra.mxu0 %v199
    %930 = vmatpush.msra.mxu0 %v197
    %931 = vmatpush.msra.mxu0 %v195
    %932 = vmatmul.f32.gmra.mxu0 %v914
    %v933 = vpop.f32.mrf.mxu0
    %v934 = vadd.f32 0.0, %v933
    %935 = vdwg.mxu0
    %936 = vmatpush.msra.mxu0 0.0
    %937 = vmatpush.msra.mxu0 0.0
    %938 = vmatpush.msra.mxu0 0.0
    %939 = vmatpush.msra.mxu0 0.0
    %940 = vmatpush.msra.mxu0 0.0
    %941 = vmatpush.msra.mxu0 0.0
    %942 = vmatpush.msra.mxu0 0.0
    %943 = vmatpush.msra.mxu0 0.0
    %944 = vmatpush.msra.mxu0 %v210
    %945 = vmatpush.msra.mxu0 %v208
    %946 = vmatpush.msra.mxu0 %v206
    %947 = vmatpush.msra.mxu0 %v204
    %948 = vmatpush.msra.mxu0 %v202
    %949 = vmatpush.msra.mxu0 %v200
    %950 = vmatpush.msra.mxu0 %v198
    %951 = vmatpush.msra.mxu0 %v196
    %952 = vmatmul.f32.gmra.mxu0 %v914
    %v953 = vpop.f32.mrf.mxu0
    %v954 = vadd.f32 0.0, %v953
    %955 = vdwg.mxu0
    %v956 = vld [vmem:[#allocation2 + $0x70] sm:$0xff]
    %v957 = vadd.f32 %v956, %v934
    %v958 = vld [vmem:[#allocation2 + $0x8] sm:$0xff]
    %v959 = vadd.f32 %v958, %v954
    %v960 = vmul.f32 %v957, 0.5
    %v961 = vtanh.pop %v960
    %v962 = vmul.f32 %v961, 0.5
    %v963 = vadd.f32 %v962, 0.5
    %v964 = vtanh.pop %v957
    %v965 = vmul.f32 %v963, %v875
    %967 = vrot.lane.b32.xlu0 %v964, 64
    %v968 = vpop.permute.xlu0 %967
    %v970 = vmul.f32 %v963, %v968
    %972 = vrot.lane.b32.xlu0 %v970, 32
    %v973 = vpop.permute.xlu0 %972
    %v975 = vadd.f32 %v965, %v973
    %v976 = vtanh.pop %v975
    %978 = vrot.lane.b32.xlu0 %v976, 64
    %v979 = vpop.permute.xlu0 %978
    %v981 = vmul.f32 %v963, %v979
    %v982 = vmul.f32 %v959, 0.5
    %v983 = vtanh.pop %v982
    %v984 = vmul.f32 %v983, 0.5
    %v985 = vadd.f32 %v984, 0.5
    %v986 = vtanh.pop %v959
    %v987 = vmul.f32 %v985, %v897
    %989 = vrot.lane.b32.xlu0 %v986, 64
    %v990 = vpop.permute.xlu0 %989
    %v992 = vmul.f32 %v985, %v990
    %994 = vrot.lane.b32.xlu0 %v992, 32
    %v995 = vpop.permute.xlu0 %994
    %v997 = vadd.f32 %v987, %v995
    %v998 = vtanh.pop %v997
    %1000 = vrot.lane.b32.xlu0 %v998, 64
    %v1001 = vpop.permute.xlu0 %1000
    %v1003 = vmul.f32 %v985, %v1001
    %1005 = vrot.lane.b32.xlu0 %v1003, 64
    %v1006 = vpop.permute.xlu0 %1005
    %v1008 = vsel %vm311, %v305, %v1006
    %v1009 = vsel %vm311, %v406, %v910
    %v1010 = vsel %vm311, %v506, %v810
    %v1011 = vsel %vm311, %v606, %v710
    %v1012 = vsel %vm311, %v706, %v610
    %v1013 = vsel %vm311, %v806, %v510
    %v1014 = vsel %vm311, %v906, %v410
    %1016 = vrot.lane.b32.xlu0 %v981, 32
    %v1017 = vpop.permute.xlu0 %1016
    %v1019 = vsel %vm311, %v1017, %v309
    %v1020 = vld [vmem:[%s4] sm:$0xff]
    %v1021 = vld [vmem:[%s4 + $0x8] sm:$0xff]
    %v1022 = vld [vmem:[%s4 + $0x10] sm:$0xff]
    %v1023 = vld [vmem:[%s4 + $0x18] sm:$0xff]
    %v1024 = vld [vmem:[%s4 + $0x20] sm:$0xff]
    %v1025 = vld [vmem:[%s4 + $0x28] sm:$0xff]
    %v1026 = vld [vmem:[%s4 + $0x30] sm:$0xff]
    %v1027 = vld [vmem:[%s4 + $0x38] sm:$0xff]
    %v1028 = vld [vmem:[#allocation3] sm:$0x1]
    %v1030 = vperm.slane %v1028, 0
    %v1033 = vsel %vm211, %v1008, 0
    %v1036 = vsel %vm211, %v1009, 0
    %v1039 = vsel %vm211, %v1010, 0
    %v1042 = vsel %vm211, %v1011, 0
    %v1045 = vsel %vm211, %v1012, 0
    %v1048 = vsel %vm211, %v1013, 0
    %v1051 = vsel %vm211, %v1014, 0
    %v1054 = vsel %vm211, %v1019, 0
    %1056 = vmatpush.msra.mxu0 0.0
    %1057 = vmatpush.msra.mxu0 0.0
    %1058 = vmatpush.msra.mxu0 0.0
    %1059 = vmatpush.msra.mxu0 0.0
    %1060 = vmatpush.msra.mxu0 0.0
    %1061 = vmatpush.msra.mxu0 0.0
    %1062 = vmatpush.msra.mxu0 0.0
    %1063 = vmatpush.msra.mxu0 0.0
    %1064 = vmatpush.msra.mxu0 %v1027
    %1065 = vmatpush.msra.mxu0 %v1026
    %1066 = vmatpush.msra.mxu0 %v1025
    %1067 = vmatpush.msra.mxu0 %v1024
    %1068 = vmatpush.msra.mxu0 %v1023
    %1069 = vmatpush.msra.mxu0 %v1022
    %1070 = vmatpush.msra.mxu0 %v1021
    %1071 = vmatpush.msra.mxu0 %v1020
    %1072 = vmatmul.f32.gmra.mxu0 %v1033
    %v1073 = vpop.f32.mrf.mxu0
    %v1074 = vadd.f32 %v1030, %v1073
    %1075 = vmatmul.f32.gmra.mxu0 %v1036
    %v1076 = vpop.f32.mrf.mxu0
    %v1077 = vadd.f32 %v1030, %v1076
    %1078 = vmatmul.f32.gmra.mxu0 %v1039
    %v1079 = vpop.f32.mrf.mxu0
    %v1080 = vadd.f32 %v1030, %v1079
    %1081 = vmatmul.f32.gmra.mxu0 %v1042
    %v1082 = vpop.f32.mrf.mxu0
    %v1083 = vadd.f32 %v1030, %v1082
    %1084 = vmatmul.f32.gmra.mxu0 %v1045
    %v1085 = vpop.f32.mrf.mxu0
    %v1086 = vadd.f32 %v1030, %v1085
    %1087 = vmatmul.f32.gmra.mxu0 %v1048
    %v1088 = vpop.f32.mrf.mxu0
    %v1089 = vadd.f32 %v1030, %v1088
    %1090 = vmatmul.f32.gmra.mxu0 %v1051
    %v1091 = vpop.f32.mrf.mxu0
    %v1092 = vadd.f32 %v1030, %v1091
    %1093 = vmatmul.f32.gmra.mxu0 %v1054
    %v1094 = vpop.f32.mrf.mxu0
    %v1095 = vadd.f32 %v1030, %v1094
    %1096 = vdwg.mxu0
    %vm1097 = vcmask 7168
    %v1098 = vsel %vm1097, %v1074, -inf
    %v1099 = vsel %vm1097, %v1077, -inf
    %v1100 = vsel %vm1097, %v1080, -inf
    %v1101 = vsel %vm1097, %v1083, -inf
    %v1102 = vsel %vm1097, %v1086, -inf
    %v1103 = vmax.f32 %v1098, %v1102
    %v1104 = vsel %vm1097, %v1089, -inf
    %v1105 = vmax.f32 %v1099, %v1104
    %v1106 = vsel %vm1097, %v1092, -inf
    %v1107 = vmax.f32 %v1100, %v1106
    %v1108 = vsel %vm1097, %v1095, -inf
    %v1109 = vmax.f32 %v1101, %v1108
    %v1110 = vmax.f32 %v1103, %v1105
    %v1111 = vmax.f32 %v1107, %v1109
    %v1112 = vmax.f32 %v1110, %v1111
    %v1113 = vsub.f32 %v1074, %v1112
    %v1114 = vsub.f32 %v1077, %v1112
    %v1115 = vsub.f32 %v1080, %v1112
    %v1116 = vsub.f32 %v1083, %v1112
    %v1117 = vsub.f32 %v1086, %v1112
    %v1118 = vsub.f32 %v1089, %v1112
    %v1119 = vsub.f32 %v1092, %v1112
    %v1120 = vsub.f32 %v1095, %v1112
    %v1121 = vmul.f32 %v1113, 1.442695
    %v1122 = vpow.pop %v1121
    %v1123 = vmul.f32 %v1114, 1.442695
    %v1124 = vpow.pop %v1123
    %v1125 = vmul.f32 %v1115, 1.442695
    %v1126 = vpow.pop %v1125
    %v1127 = vmul.f32 %v1116, 1.442695
    %v1128 = vpow.pop %v1127
    %v1129 = vmul.f32 %v1117, 1.442695
    %v1130 = vpow.pop %v1129
    %v1131 = vmul.f32 %v1118, 1.442695
    %v1132 = vpow.pop %v1131
    %v1133 = vmul.f32 %v1119, 1.442695
    %v1134 = vpow.pop %v1133
    %v1135 = vmul.f32 %v1120, 1.442695
    %v1136 = vpow.pop %v1135
    %v1137 = vsel %vm1097, %v1122, 0.0
    %v1138 = vsel %vm1097, %v1124, 0.0
    %v1139 = vadd.f32 %v1137, %v1138
    %v1140 = vsel %vm1097, %v1126, 0.0
    %v1141 = vadd.f32 %v1139, %v1140
    %v1142 = vsel %vm1097, %v1128, 0.0
    %v1143 = vadd.f32 %v1141, %v1142
    %v1144 = vsel %vm1097, %v1130, 0.0
    %v1145 = vadd.f32 %v1143, %v1144
    %v1146 = vsel %vm1097, %v1132, 0.0
    %v1147 = vadd.f32 %v1145, %v1146
    %v1148 = vsel %vm1097, %v1134, 0.0
    %v1149 = vadd.f32 %v1147, %v1148
    %v1150 = vsel %vm1097, %v1136, 0.0
    %v1151 = vadd.f32 %v1149, %v1150
    %v1152 = vrcp.pop %v1151
    %v1153 = vmul.f32 %v1151, %v1152
    %v1154 = vsub.f32 1.0, %v1153
    %v1155 = vmul.f32 %v1152, %v1154
    %v1156 = vadd.f32 %v1152, %v1155
    %vm1157 = vweird.f32 %v1151
    %vm1158 = vweird.f32 %v1152
    %vm1159 = vmor %vm1157, %vm1158
    %v1160 = vsel %vm1159, %v1152, %v1156
    %v1161 = vand.u32 2147483647, %v1151
    %vm1162 = vcmp.eq.f32.partialorder %v1161, 8.507059e+37
    %v1163 = vand.u32 %v1151, 2147483648
    %v1164 = vor.u32 1.1754944e-38, %v1163
    %v1165 = vsel %vm1162, %v1164, %v1160
    %v1166 = vmul.f32 %v1122, %v1165
    %v1167 = vmul.f32 %v1124, %v1165
    %v1168 = vmul.f32 %v1126, %v1165
    %v1169 = vmul.f32 %v1128, %v1165
    %v1170 = vmul.f32 %v1130, %v1165
    %v1171 = vmul.f32 %v1132, %v1165
    %v1172 = vmul.f32 %v1134, %v1165
    %v1173 = vmul.f32 %v1136, %v1165
    %1175 = vset.pattern.permute.xlu0 0
    %1176 = vperm.xlu0 %1175, %v1166
    %v1177 = vpop.permute.xlu0 %1176
    %1180 = vset.pattern.permute.xlu0 0
    %1181 = vperm.xlu0 %1180, %v1167
    %v1182 = vpop.permute.xlu0 %1181
    %1185 = vset.pattern.permute.xlu0 0
    %1186 = vperm.xlu0 %1185, %v1168
    %v1187 = vpop.permute.xlu0 %1186
    %1190 = vset.pattern.permute.xlu0 0
    %1191 = vperm.xlu0 %1190, %v1169
    %v1192 = vpop.permute.xlu0 %1191
    %1195 = vset.pattern.permute.xlu0 0
    %1196 = vperm.xlu0 %1195, %v1170
    %v1197 = vpop.permute.xlu0 %1196
    %1200 = vset.pattern.permute.xlu0 0
    %1201 = vperm.xlu0 %1200, %v1171
    %v1202 = vpop.permute.xlu0 %1201
    %1205 = vset.pattern.permute.xlu0 0
    %1206 = vperm.xlu0 %1205, %v1172
    %v1207 = vpop.permute.xlu0 %1206
    %1210 = vset.pattern.permute.xlu0 0
    %1211 = vperm.xlu0 %1210, %v1173
    %v1212 = vpop.permute.xlu0 %1211
    %v1214 = vmul.f32 %v1008, %v1177
    %v1215 = vmul.f32 %v1009, %v1182
    %v1216 = vmul.f32 %v1010, %v1187
    %v1217 = vmul.f32 %v1011, %v1192
    %v1218 = vmul.f32 %v1012, %v1197
    %v1219 = vmul.f32 %v1013, %v1202
    %v1220 = vmul.f32 %v1014, %v1207
    %v1221 = vmul.f32 %v1019, %v1212
    %v1222 = vsel %vm211, %v1214, 0.0
    %v1223 = vsel %vm211, %v1215, 0.0
    %v1224 = vadd.f32 %v1222, %v1223
    %v1225 = vsel %vm211, %v1216, 0.0
    %v1226 = vadd.f32 %v1224, %v1225
    %v1227 = vsel %vm211, %v1217, 0.0
    %v1228 = vadd.f32 %v1226, %v1227
    %v1229 = vsel %vm211, %v1218, 0.0
    %v1230 = vadd.f32 %v1228, %v1229
    %v1231 = vsel %vm211, %v1219, 0.0
    %v1232 = vadd.f32 %v1230, %v1231
    %v1233 = vsel %vm211, %v1220, 0.0
    %v1234 = vadd.f32 %v1232, %v1233
    %v1235 = vsel %vm211, %v1221, 0.0
    %v1236 = vadd.f32 %v1234, %v1235
    %v1237 = vld [vmem:[#allocation4] sm:$0xff]
    %v1238 = vld [vmem:[#allocation4 + $0x8] sm:$0xff]
    %v1239 = vld [vmem:[#allocation4 + $0x10] sm:$0xff]
    %v1240 = vld [vmem:[#allocation4 + $0x18] sm:$0xff]
    %v1241 = vld [vmem:[#allocation4 + $0x20] sm:$0xff]
    %v1242 = vld [vmem:[#allocation4 + $0x28] sm:$0xff]
    %v1243 = vld [vmem:[#allocation4 + $0x30] sm:$0xff]
    %v1244 = vld [vmem:[#allocation4 + $0x38] sm:$0xff]
    %v1245 = vld [vmem:[%s7] sm:$0x1]
    %v1247 = vperm.slane %v1245, 0
    %v1250 = vsel %vm211, %v1236, 0
    %1252 = vmatpush.msra.mxu0 0.0
    %1253 = vmatpush.msra.mxu0 0.0
    %1254 = vmatpush.msra.mxu0 0.0
    %1255 = vmatpush.msra.mxu0 0.0
    %1256 = vmatpush.msra.mxu0 0.0
    %1257 = vmatpush.msra.mxu0 0.0
    %1258 = vmatpush.msra.mxu0 0.0
    %1259 = vmatpush.msra.mxu0 0.0
    %1260 = vmatpush.msra.mxu0 %v1244
    %1261 = vmatpush.msra.mxu0 %v1243
    %1262 = vmatpush.msra.mxu0 %v1242
    %1263 = vmatpush.msra.mxu0 %v1241
    %1264 = vmatpush.msra.mxu0 %v1240
    %1265 = vmatpush.msra.mxu0 %v1239
    %1266 = vmatpush.msra.mxu0 %v1238
    %1267 = vmatpush.msra.mxu0 %v1237
    %1268 = vmatmul.f32.gmra.mxu0 %v1250
    %v1269 = vpop.f32.mrf.mxu0
    %v1270 = vadd.f32 %v1247, %v1269
    %1271 = vdwg.mxu0
    %1272 = vst [vmem:[#allocation7] sm:$0xff] %v1270
    // Predicated region
    $region38: #{tpu_custom_call.1} parent=1 // pred_check
      _
    $region39: #{tpu_custom_call.1} parent=1 // pred_check_branch
      %1274 = sbr.rel (0) target = $region41
    $region40: #{tpu_custom_call.1} parent=1 // pred_region
      %1276 = vsyncadd [#allocation6], 0
      %s1278 = sshll.u32 [#allocation7], 4
      %s1279 = int_to_ptr.vmem [resolvable:$true] %s1278
      %s1280 = sshll.u32 %s8, 4
      %s1281 = int_to_ptr.hbm [resolvable:$true] %s1280
      %1283 = dma.vmem_to_hbm [thread:$0]  %s1279, 128, %s1281, [#allocation6]
    $region41: #{tpu_custom_call.1} parent=1 // pred_fallthru
      _
    // Predicated region
    $region42: #{tpu_custom_call.1} parent=1 // pred_check
      _
    $region43: #{tpu_custom_call.1} parent=1 // pred_check_branch
      %1285 = sbr.rel (0) target = $region45
    $region44: #{tpu_custom_call.1} parent=1 // pred_region
      %1287 = dma.done [#allocation6], 128
    $region45: #{tpu_custom_call.1} parent=1 // pred_fallthru
      _
    %1288 = vsyncpa [#allocation5], 1
    %1289 = vsyncpa [#allocation6], 1

</llo_original>
